<compile_context>
chip_gen: v7x
topology: tpu7x:2x2x1
jax: 0.10.0
libtpu: 0.0.40
codegen_flags: <defaults>
</compile_context>

<pallas_src>
import math
import functools
import numpy as np
import jax
import jax.numpy as jnp
from jax.experimental import pallas as pl
from jax.experimental.pallas import tpu as pltpu


# ----------------------------- operator builders ---------------------------- #

def bilinear_matrix(in_size, out_size):
    """(in_size, out_size) matrix for 1-D bilinear resize, align_corners=False."""
    W = np.zeros((in_size, out_size), dtype=np.float32)
    scale = in_size / out_size
    for i in range(out_size):
        src = scale * (i + 0.5) - 0.5
        src = max(src, 0.0)
        x0 = min(int(math.floor(src)), in_size - 1)
        x1 = min(x0 + 1, in_size - 1)
        lam = src - x0
        W[x0, i] += 1.0 - lam
        W[x1, i] += lam
    return W


def adaptive_pool_matrix(L, out):
    """(L, out) averaging matrix replicating torch.adaptive_avg_pool1d."""
    P = np.zeros((L, out), dtype=np.float32)
    for j in range(out):
        start = (j * L) // out
        end = -((-(j + 1) * L) // out)  # ceil((j+1)*L/out)
        P[start:end, j] = 1.0 / (end - start)
    return P


def build_params(w, b, c0, c1, in_ch, out_ch, s0, s1):
    """Pre-compose pool_i @ pool2_slice_i @ W^T into per-level 3x3 conv weights."""
    w_np = np.asarray(w, dtype=np.float32)                 # (out_ch, in_ch)
    b_np = np.asarray(b, dtype=np.float32)                 # (out_ch,)
    pool0 = adaptive_pool_matrix(c0 * 9, in_ch)            # (c0*9, in_ch)
    pool1 = adaptive_pool_matrix(c1 * 9, in_ch)            # (c1*9, in_ch)
    pool2 = adaptive_pool_matrix(2 * in_ch, in_ch)         # (2*in_ch, in_ch)

    # level-major stacking order (matches jnp.stack(pooled, axis=1).reshape(N,-1))
    m0 = pool0 @ pool2[:in_ch] @ w_np.T                    # (c0*9, out_ch)
    m1 = pool1 @ pool2[in_ch:] @ w_np.T                    # (c1*9, out_ch)
    # original flatten order of a patch is c*9 + ki*3 + kj -> (9, C, out_ch)
    w0 = np.transpose(m0.reshape(c0, 9, out_ch), (1, 0, 2))
    w1 = np.transpose(m1.reshape(c1, 9, out_ch), (1, 0, 2))

    wm = bilinear_matrix(s1, s0)                           # (s1, s0)
    kinterp = np.kron(wm, wm)                              # (s1*s1, s0*s0)

    return {
        'w0': jnp.asarray(w0, dtype=jnp.bfloat16),
        'w1': jnp.asarray(w1, dtype=jnp.bfloat16),
        'kt': jnp.asarray(kinterp.T, dtype=jnp.float32),   # (s0*s0, s1*s1)
        'b2d': jnp.asarray(b_np).reshape(1, out_ch),
        # raw operators kept only for the pure-JAX reference check
        'pool0': jnp.asarray(pool0), 'pool1': jnp.asarray(pool1),
        'pool2': jnp.asarray(pool2), 'kinterp': jnp.asarray(kinterp),
        'w': jnp.asarray(w_np), 'b': jnp.asarray(b_np),
    }


# ------------------------------- fused kernel ------------------------------- #

def _fused_kernel(x0_ref, x1_ref, w0_ref, w1_ref, kt_ref, b_ref, o_ref, *,
                  s0, s1, c0, c1, n_out):
    """One grid step == one batch element.

    x0_ref: (1, s0+2, s0+2, c0) padded NHWC level-0 features (bf16)
    x1_ref: (1, s1+2, s1+2, c1) padded NHWC level-1 features (bf16)
    w0_ref: (9, c0, n_out)  per-shift composed operator, level 0 (bf16)
    w1_ref: (9, c1, n_out)  per-shift composed operator, level 1 (bf16)
    kt_ref: (s0*s0, s1*s1)  transposed kron bilinear-upsample operator (f32)
    b_ref : (1, n_out)      bias (f32)
    o_ref : (1, s0*s0, n_out)
    """
    x0 = x0_ref[0]                                   # (s0+2, s0+2, c0)
    x1 = x1_ref[0]                                   # (s1+2, s1+2, c1)

    acc0 = jnp.zeros((s0 * s0, n_out), jnp.float32)
    acc1 = jnp.zeros((s1 * s1, n_out), jnp.float32)

    # 3x3 "unfold" == 9 statically-shifted views gathered in-kernel (no HBM
    # patchify copies); each shift is one small MXU matmul, f32 accumulate.
    for ki in range(3):
        for kj in range(3):
            kidx = ki * 3 + kj
            p0 = x0[ki:ki + s0, kj:kj + s0, :].reshape(s0 * s0, c0)
            acc0 = acc0 + jnp.dot(p0, w0_ref[kidx],
                                  preferred_element_type=jnp.float32)
            p1 = x1[ki:ki + s1, kj:kj + s1, :].reshape(s1 * s1, c1)
            acc1 = acc1 + jnp.dot(p1, w1_ref[kidx],
                                  preferred_element_type=jnp.float32)

    # Pool-before-upsample: bilinear upsample the already-pooled level-1 result
    # (out_ch lanes) instead of the raw C*9 patch tensor.
    up1 = jnp.dot(kt_ref[...], acc1, preferred_element_type=jnp.float32)

    # Single fused epilogue: add levels + bias, one store of the final output.
    o_ref[0] = acc0 + up1 + b_ref[...]


def generator_forward(features, params, input_size):
    """features: [f0 (B,c0,s0,s0), f1 (B,c1,s1,s1)] NCHW -> (B*s0*s0, out_ch)."""
    s0, s1 = input_size // 8, input_size // 16
    f0, f1 = features
    B, c0 = f0.shape[0], f0.shape[1]
    c1 = f1.shape[1]
    n_out = params['w0'].shape[-1]

    # Only remaining plain-JAX glue: NCHW -> NHWC relayout + zero-pad + bf16 cast
    # (one copy of each feature map instead of the old 9x patchify blow-up).
    x0p = jnp.pad(jnp.transpose(f0, (0, 2, 3, 1)),
                  ((0, 0), (1, 1), (1, 1), (0, 0))).astype(jnp.bfloat16)
    x1p = jnp.pad(jnp.transpose(f1, (0, 2, 3, 1)),
                  ((0, 0), (1, 1), (1, 1), (0, 0))).astype(jnp.bfloat16)

    kernel = functools.partial(_fused_kernel, s0=s0, s1=s1, c0=c0, c1=c1,
                               n_out=n_out)

    out = pl.pallas_call(
        kernel,
        out_shape=jax.ShapeDtypeStruct((B, s0 * s0, n_out), jnp.float32),
        grid=(B,),
        in_specs=[
            pl.BlockSpec((1, s0 + 2, s0 + 2, c0), lambda bi: (bi, 0, 0, 0)),
            pl.BlockSpec((1, s1 + 2, s1 + 2, c1), lambda bi: (bi, 0, 0, 0)),
            pl.BlockSpec((9, c0, n_out), lambda bi: (0, 0, 0)),
            pl.BlockSpec((9, c1, n_out), lambda bi: (0, 0, 0)),
            pl.BlockSpec((s0 * s0, s1 * s1), lambda bi: (0, 0)),
            pl.BlockSpec((1, n_out), lambda bi: (0, 0)),
        ],
        out_specs=pl.BlockSpec((1, s0 * s0, n_out), lambda bi: (bi, 0, 0)),
        compiler_params=pltpu.CompilerParams(
            dimension_semantics=("parallel",),        # 2 TCs on v7x
            vmem_limit_bytes=32 * 1024 * 1024),       # headroom for larger sizes
    )(x0p, x1p, params['w0'], params['w1'], params['kt'], params['b2d'])

    return out.reshape(B * s0 * s0, n_out)


# ----------------------- pure-JAX reference (original order) ---------------- #

def patchify(f):
    """functional.unfold(k=3, p=1, s=1): (B,C,H,W) -> (B, H*W, C, 3, 3)."""
    B, C, H, W = f.shape
    fp = jnp.pad(f, ((0, 0), (0, 0), (1, 1), (1, 1)))
    cols = [fp[:, :, ki:ki + H, kj:kj + W] for ki in range(3) for kj in range(3)]
    p = jnp.stack(cols, axis=2).reshape(B, C, 3, 3, H * W)
    return jnp.transpose(p, (0, 4, 1, 2, 3))


def reference_forward(f0, f1, params, input_size):
    s0, s1 = input_size // 8, input_size // 16
    B, c1 = f0.shape[0], f1.shape[1]
    x0 = patchify(f0)                                       # (B, s0*s0, c0, 3, 3)
    x1 = patchify(f1)                                       # (B, s1*s1, c1, 3, 3)
    y = x1.reshape(B, s1, s1, c1, 3, 3)
    y = jnp.transpose(y, (0, 3, 4, 5, 1, 2)).reshape(B * c1 * 9, s1 * s1)
    y = y @ params['kinterp']                               # upsample to s0*s0
    y = y.reshape(B, c1, 3, 3, s0, s0)
    y = jnp.transpose(y, (0, 4, 5, 1, 2, 3)).reshape(B, s0 * s0, c1, 3, 3)
    N = B * s0 * s0
    p0 = x0.reshape(N, -1) @ params['pool0']
    p1 = y.reshape(N, -1) @ params['pool1']
    z = jnp.stack([p0, p1], axis=1).reshape(N, -1) @ params['pool2']
    return z @ params['w'].T + params['b']


# ----------------------------------- main ------------------------------------ #

if __name__ == "__main__":
    key = jax.random.PRNGKey(0)
    input_size = 32
    B = 2
    c0, c1 = 8, 16               # channels of the two hooked pyramid levels
    in_channels = 24
    out_channels = 16
    s0, s1 = input_size // 8, input_size // 16

    k1, k2, k3, k4 = jax.random.split(key, 4)
    f0 = jax.random.normal(k1, (B, c0, s0, s0), dtype=jnp.float32)   # NCHW
    f1 = jax.random.normal(k2, (B, c1, s1, s1), dtype=jnp.float32)   # NCHW

    # Linear(in_channels, out_channels): xavier_normal_ weight, uniform bias
    std = math.sqrt(2.0 / (in_channels + out_channels))
    w = jax.random.normal(k3, (out_channels, in_channels), dtype=jnp.float32) * std
    bound = 1.0 / math.sqrt(in_channels)
    b = jax.random.uniform(k4, (out_channels,), minval=-bound, maxval=bound,
                           dtype=jnp.float32)

    params = build_params(w, b, c0, c1, in_channels, out_channels, s0, s1)

    out = generator_forward([f0, f1], params, input_size)
    out = jax.block_until_ready(out)
    assert out.shape == (B * s0 * s0, out_channels), out.shape
    assert bool(jnp.isfinite(out).all())

    # numerical check against the original (un-fused, un-commuted) pipeline
    ref = reference_forward(f0, f1, params, input_size)
    err = float(jnp.max(jnp.abs(out - ref)))
    assert err < 3e-2, f"max abs error vs reference: {err}"

    print("KERNEL_OK")
</pallas_src>

<mosaic_0001>
module attributes {stable_mosaic.version = 11 : i64} {
  func.func @_fused_kernel(%arg0: i32, %arg1: memref<1x6x6x8xbf16, #tpu.memory_space<vmem>>, %arg2: memref<1x4x4x16xbf16, #tpu.memory_space<vmem>>, %arg3: memref<9x8x16xbf16, #tpu.memory_space<vmem>>, %arg4: memref<9x16x16xbf16, #tpu.memory_space<vmem>>, %arg5: memref<16x4xf32, #tpu.memory_space<vmem>>, %arg6: memref<1x16xf32, #tpu.memory_space<vmem>>, %arg7: memref<1x16x16xf32, #tpu.memory_space<vmem>>) attributes {dimension_semantics = [#tpu.dimension_semantics<parallel>], iteration_bounds = array<i64: 2>, scalar_prefetch = 0 : i64, scratch_operands = 0 : i64, tpu.core_type = #tpu.core_type<tc>, window_params = [{transform_indices = @transform_0, window_bounds = array<i64: 1, 6, 6, 8>}, {transform_indices = @transform_1, window_bounds = array<i64: 1, 4, 4, 16>}, {pipeline_mode = #tpu.pipeline_mode<synchronous>, transform_indices = @transform_2, window_bounds = array<i64: 9, 8, 16>}, {pipeline_mode = #tpu.pipeline_mode<synchronous>, transform_indices = @transform_3, window_bounds = array<i64: 9, 16, 16>}, {pipeline_mode = #tpu.pipeline_mode<synchronous>, transform_indices = @transform_4, window_bounds = array<i64: 16, 4>}, {pipeline_mode = #tpu.pipeline_mode<synchronous>, transform_indices = @transform_5, window_bounds = array<i64: 1, 16>}, {transform_indices = @transform_6, window_bounds = array<i64: 1, 16, 16>}]} {
    %c0 = arith.constant 0 : index
    %c0_0 = arith.constant 0 : index
    %c0_1 = arith.constant 0 : index
    %c0_2 = arith.constant 0 : index
    %0 = vector.load %arg1[%c0, %c0_0, %c0_1, %c0_2] : memref<1x6x6x8xbf16, #tpu.memory_space<vmem>>, vector<1x6x6x8xbf16>
    %1 = vector.shape_cast %0 : vector<1x6x6x8xbf16> to vector<6x6x8xbf16>
    %c0_3 = arith.constant 0 : index
    %c0_4 = arith.constant 0 : index
    %c0_5 = arith.constant 0 : index
    %c0_6 = arith.constant 0 : index
    %2 = vector.load %arg2[%c0_3, %c0_4, %c0_5, %c0_6] : memref<1x4x4x16xbf16, #tpu.memory_space<vmem>>, vector<1x4x4x16xbf16>
    %3 = vector.shape_cast %2 : vector<1x4x4x16xbf16> to vector<4x4x16xbf16>
    %cst = arith.constant 0.000000e+00 : f32
    %4 = vector.broadcast %cst : f32 to vector<16x16xf32>
    %cst_7 = arith.constant 0.000000e+00 : f32
    %5 = vector.broadcast %cst_7 : f32 to vector<4x16xf32>
    %6 = vector.extract_strided_slice %1 {offsets = [0, 0, 0], sizes = [4, 4, 8], strides = [1, 1, 1]} : vector<6x6x8xbf16> to vector<4x4x8xbf16>
    %7 = vector.shape_cast %6 : vector<4x4x8xbf16> to vector<16x8xbf16>
    %c0_8 = arith.constant 0 : index
    %c0_9 = arith.constant 0 : index
    %c0_10 = arith.constant 0 : index
    %8 = vector.load %arg3[%c0_8, %c0_9, %c0_10] : memref<9x8x16xbf16, #tpu.memory_space<vmem>>, vector<1x8x16xbf16>
    %9 = vector.shape_cast %8 : vector<1x8x16xbf16> to vector<8x16xbf16>
    %cst_11 = arith.constant dense<0.000000e+00> : vector<16x16xf32>
    %10 = tpu.matmul %7, %9, %cst_11 {dimension_numbers = #tpu.dot_dimension_numbers<[1], [0], [0], [1], [0, 0, 1, 1], [], []>} : vector<16x8xbf16>, vector<8x16xbf16>, vector<16x16xf32> -> vector<16x16xf32>
    %11 = arith.addf %4, %10 : vector<16x16xf32>
    %12 = vector.extract_strided_slice %3 {offsets = [0, 0, 0], sizes = [2, 2, 16], strides = [1, 1, 1]} : vector<4x4x16xbf16> to vector<2x2x16xbf16>
    %13 = vector.shape_cast %12 : vector<2x2x16xbf16> to vector<4x16xbf16>
    %c0_12 = arith.constant 0 : index
    %c0_13 = arith.constant 0 : index
    %c0_14 = arith.constant 0 : index
    %14 = vector.load %arg4[%c0_12, %c0_13, %c0_14] : memref<9x16x16xbf16, #tpu.memory_space<vmem>>, vector<1x16x16xbf16>
    %15 = vector.shape_cast %14 : vector<1x16x16xbf16> to vector<16x16xbf16>
    %cst_15 = arith.constant dense<0.000000e+00> : vector<4x16xf32>
    %16 = tpu.matmul %13, %15, %cst_15 {dimension_numbers = #tpu.dot_dimension_numbers<[1], [0], [0], [1], [0, 0, 1, 1], [], []>} : vector<4x16xbf16>, vector<16x16xbf16>, vector<4x16xf32> -> vector<4x16xf32>
    %17 = arith.addf %5, %16 : vector<4x16xf32>
    %18 = vector.extract_strided_slice %1 {offsets = [0, 1, 0], sizes = [4, 4, 8], strides = [1, 1, 1]} : vector<6x6x8xbf16> to vector<4x4x8xbf16>
    %19 = vector.shape_cast %18 : vector<4x4x8xbf16> to vector<16x8xbf16>
    %c1 = arith.constant 1 : index
    %c0_16 = arith.constant 0 : index
    %c0_17 = arith.constant 0 : index
    %20 = vector.load %arg3[%c1, %c0_16, %c0_17] : memref<9x8x16xbf16, #tpu.memory_space<vmem>>, vector<1x8x16xbf16>
    %21 = vector.shape_cast %20 : vector<1x8x16xbf16> to vector<8x16xbf16>
    %cst_18 = arith.constant dense<0.000000e+00> : vector<16x16xf32>
    %22 = tpu.matmul %19, %21, %cst_18 {dimension_numbers = #tpu.dot_dimension_numbers<[1], [0], [0], [1], [0, 0, 1, 1], [], []>} : vector<16x8xbf16>, vector<8x16xbf16>, vector<16x16xf32> -> vector<16x16xf32>
    %23 = arith.addf %11, %22 : vector<16x16xf32>
    %24 = vector.extract_strided_slice %3 {offsets = [0, 1, 0], sizes = [2, 2, 16], strides = [1, 1, 1]} : vector<4x4x16xbf16> to vector<2x2x16xbf16>
    %25 = vector.shape_cast %24 : vector<2x2x16xbf16> to vector<4x16xbf16>
    %c1_19 = arith.constant 1 : index
    %c0_20 = arith.constant 0 : index
    %c0_21 = arith.constant 0 : index
    %26 = vector.load %arg4[%c1_19, %c0_20, %c0_21] : memref<9x16x16xbf16, #tpu.memory_space<vmem>>, vector<1x16x16xbf16>
    %27 = vector.shape_cast %26 : vector<1x16x16xbf16> to vector<16x16xbf16>
    %cst_22 = arith.constant dense<0.000000e+00> : vector<4x16xf32>
    %28 = tpu.matmul %25, %27, %cst_22 {dimension_numbers = #tpu.dot_dimension_numbers<[1], [0], [0], [1], [0, 0, 1, 1], [], []>} : vector<4x16xbf16>, vector<16x16xbf16>, vector<4x16xf32> -> vector<4x16xf32>
    %29 = arith.addf %17, %28 : vector<4x16xf32>
    %30 = vector.extract_strided_slice %1 {offsets = [0, 2, 0], sizes = [4, 4, 8], strides = [1, 1, 1]} : vector<6x6x8xbf16> to vector<4x4x8xbf16>
    %31 = vector.shape_cast %30 : vector<4x4x8xbf16> to vector<16x8xbf16>
    %c2 = arith.constant 2 : index
    %c0_23 = arith.constant 0 : index
    %c0_24 = arith.constant 0 : index
    %32 = vector.load %arg3[%c2, %c0_23, %c0_24] : memref<9x8x16xbf16, #tpu.memory_space<vmem>>, vector<1x8x16xbf16>
    %33 = vector.shape_cast %32 : vector<1x8x16xbf16> to vector<8x16xbf16>
    %cst_25 = arith.constant dense<0.000000e+00> : vector<16x16xf32>
    %34 = tpu.matmul %31, %33, %cst_25 {dimension_numbers = #tpu.dot_dimension_numbers<[1], [0], [0], [1], [0, 0, 1, 1], [], []>} : vector<16x8xbf16>, vector<8x16xbf16>, vector<16x16xf32> -> vector<16x16xf32>
    %35 = arith.addf %23, %34 : vector<16x16xf32>
    %36 = vector.extract_strided_slice %3 {offsets = [0, 2, 0], sizes = [2, 2, 16], strides = [1, 1, 1]} : vector<4x4x16xbf16> to vector<2x2x16xbf16>
    %37 = vector.shape_cast %36 : vector<2x2x16xbf16> to vector<4x16xbf16>
    %c2_26 = arith.constant 2 : index
    %c0_27 = arith.constant 0 : index
    %c0_28 = arith.constant 0 : index
    %38 = vector.load %arg4[%c2_26, %c0_27, %c0_28] : memref<9x16x16xbf16, #tpu.memory_space<vmem>>, vector<1x16x16xbf16>
    %39 = vector.shape_cast %38 : vector<1x16x16xbf16> to vector<16x16xbf16>
    %cst_29 = arith.constant dense<0.000000e+00> : vector<4x16xf32>
    %40 = tpu.matmul %37, %39, %cst_29 {dimension_numbers = #tpu.dot_dimension_numbers<[1], [0], [0], [1], [0, 0, 1, 1], [], []>} : vector<4x16xbf16>, vector<16x16xbf16>, vector<4x16xf32> -> vector<4x16xf32>
    %41 = arith.addf %29, %40 : vector<4x16xf32>
    %42 = vector.extract_strided_slice %1 {offsets = [1, 0, 0], sizes = [4, 4, 8], strides = [1, 1, 1]} : vector<6x6x8xbf16> to vector<4x4x8xbf16>
    %43 = vector.shape_cast %42 : vector<4x4x8xbf16> to vector<16x8xbf16>
    %c3 = arith.constant 3 : index
    %c0_30 = arith.constant 0 : index
    %c0_31 = arith.constant 0 : index
    %44 = vector.load %arg3[%c3, %c0_30, %c0_31] : memref<9x8x16xbf16, #tpu.memory_space<vmem>>, vector<1x8x16xbf16>
    %45 = vector.shape_cast %44 : vector<1x8x16xbf16> to vector<8x16xbf16>
    %cst_32 = arith.constant dense<0.000000e+00> : vector<16x16xf32>
    %46 = tpu.matmul %43, %45, %cst_32 {dimension_numbers = #tpu.dot_dimension_numbers<[1], [0], [0], [1], [0, 0, 1, 1], [], []>} : vector<16x8xbf16>, vector<8x16xbf16>, vector<16x16xf32> -> vector<16x16xf32>
    %47 = arith.addf %35, %46 : vector<16x16xf32>
    %48 = vector.extract_strided_slice %3 {offsets = [1, 0, 0], sizes = [2, 2, 16], strides = [1, 1, 1]} : vector<4x4x16xbf16> to vector<2x2x16xbf16>
    %49 = vector.shape_cast %48 : vector<2x2x16xbf16> to vector<4x16xbf16>
    %c3_33 = arith.constant 3 : index
    %c0_34 = arith.constant 0 : index
    %c0_35 = arith.constant 0 : index
    %50 = vector.load %arg4[%c3_33, %c0_34, %c0_35] : memref<9x16x16xbf16, #tpu.memory_space<vmem>>, vector<1x16x16xbf16>
    %51 = vector.shape_cast %50 : vector<1x16x16xbf16> to vector<16x16xbf16>
    %cst_36 = arith.constant dense<0.000000e+00> : vector<4x16xf32>
    %52 = tpu.matmul %49, %51, %cst_36 {dimension_numbers = #tpu.dot_dimension_numbers<[1], [0], [0], [1], [0, 0, 1, 1], [], []>} : vector<4x16xbf16>, vector<16x16xbf16>, vector<4x16xf32> -> vector<4x16xf32>
    %53 = arith.addf %41, %52 : vector<4x16xf32>
    %54 = vector.extract_strided_slice %1 {offsets = [1, 1, 0], sizes = [4, 4, 8], strides = [1, 1, 1]} : vector<6x6x8xbf16> to vector<4x4x8xbf16>
    %55 = vector.shape_cast %54 : vector<4x4x8xbf16> to vector<16x8xbf16>
    %c4 = arith.constant 4 : index
    %c0_37 = arith.constant 0 : index
    %c0_38 = arith.constant 0 : index
    %56 = vector.load %arg3[%c4, %c0_37, %c0_38] : memref<9x8x16xbf16, #tpu.memory_space<vmem>>, vector<1x8x16xbf16>
    %57 = vector.shape_cast %56 : vector<1x8x16xbf16> to vector<8x16xbf16>
    %cst_39 = arith.constant dense<0.000000e+00> : vector<16x16xf32>
    %58 = tpu.matmul %55, %57, %cst_39 {dimension_numbers = #tpu.dot_dimension_numbers<[1], [0], [0], [1], [0, 0, 1, 1], [], []>} : vector<16x8xbf16>, vector<8x16xbf16>, vector<16x16xf32> -> vector<16x16xf32>
    %59 = arith.addf %47, %58 : vector<16x16xf32>
    %60 = vector.extract_strided_slice %3 {offsets = [1, 1, 0], sizes = [2, 2, 16], strides = [1, 1, 1]} : vector<4x4x16xbf16> to vector<2x2x16xbf16>
    %61 = vector.shape_cast %60 : vector<2x2x16xbf16> to vector<4x16xbf16>
    %c4_40 = arith.constant 4 : index
    %c0_41 = arith.constant 0 : index
    %c0_42 = arith.constant 0 : index
    %62 = vector.load %arg4[%c4_40, %c0_41, %c0_42] : memref<9x16x16xbf16, #tpu.memory_space<vmem>>, vector<1x16x16xbf16>
    %63 = vector.shape_cast %62 : vector<1x16x16xbf16> to vector<16x16xbf16>
    %cst_43 = arith.constant dense<0.000000e+00> : vector<4x16xf32>
    %64 = tpu.matmul %61, %63, %cst_43 {dimension_numbers = #tpu.dot_dimension_numbers<[1], [0], [0], [1], [0, 0, 1, 1], [], []>} : vector<4x16xbf16>, vector<16x16xbf16>, vector<4x16xf32> -> vector<4x16xf32>
    %65 = arith.addf %53, %64 : vector<4x16xf32>
    %66 = vector.extract_strided_slice %1 {offsets = [1, 2, 0], sizes = [4, 4, 8], strides = [1, 1, 1]} : vector<6x6x8xbf16> to vector<4x4x8xbf16>
    %67 = vector.shape_cast %66 : vector<4x4x8xbf16> to vector<16x8xbf16>
    %c5 = arith.constant 5 : index
    %c0_44 = arith.constant 0 : index
    %c0_45 = arith.constant 0 : index
    %68 = vector.load %arg3[%c5, %c0_44, %c0_45] : memref<9x8x16xbf16, #tpu.memory_space<vmem>>, vector<1x8x16xbf16>
    %69 = vector.shape_cast %68 : vector<1x8x16xbf16> to vector<8x16xbf16>
    %cst_46 = arith.constant dense<0.000000e+00> : vector<16x16xf32>
    %70 = tpu.matmul %67, %69, %cst_46 {dimension_numbers = #tpu.dot_dimension_numbers<[1], [0], [0], [1], [0, 0, 1, 1], [], []>} : vector<16x8xbf16>, vector<8x16xbf16>, vector<16x16xf32> -> vector<16x16xf32>
    %71 = arith.addf %59, %70 : vector<16x16xf32>
    %72 = vector.extract_strided_slice %3 {offsets = [1, 2, 0], sizes = [2, 2, 16], strides = [1, 1, 1]} : vector<4x4x16xbf16> to vector<2x2x16xbf16>
    %73 = vector.shape_cast %72 : vector<2x2x16xbf16> to vector<4x16xbf16>
    %c5_47 = arith.constant 5 : index
    %c0_48 = arith.constant 0 : index
    %c0_49 = arith.constant 0 : index
    %74 = vector.load %arg4[%c5_47, %c0_48, %c0_49] : memref<9x16x16xbf16, #tpu.memory_space<vmem>>, vector<1x16x16xbf16>
    %75 = vector.shape_cast %74 : vector<1x16x16xbf16> to vector<16x16xbf16>
    %cst_50 = arith.constant dense<0.000000e+00> : vector<4x16xf32>
    %76 = tpu.matmul %73, %75, %cst_50 {dimension_numbers = #tpu.dot_dimension_numbers<[1], [0], [0], [1], [0, 0, 1, 1], [], []>} : vector<4x16xbf16>, vector<16x16xbf16>, vector<4x16xf32> -> vector<4x16xf32>
    %77 = arith.addf %65, %76 : vector<4x16xf32>
    %78 = vector.extract_strided_slice %1 {offsets = [2, 0, 0], sizes = [4, 4, 8], strides = [1, 1, 1]} : vector<6x6x8xbf16> to vector<4x4x8xbf16>
    %79 = vector.shape_cast %78 : vector<4x4x8xbf16> to vector<16x8xbf16>
    %c6 = arith.constant 6 : index
    %c0_51 = arith.constant 0 : index
    %c0_52 = arith.constant 0 : index
    %80 = vector.load %arg3[%c6, %c0_51, %c0_52] : memref<9x8x16xbf16, #tpu.memory_space<vmem>>, vector<1x8x16xbf16>
    %81 = vector.shape_cast %80 : vector<1x8x16xbf16> to vector<8x16xbf16>
    %cst_53 = arith.constant dense<0.000000e+00> : vector<16x16xf32>
    %82 = tpu.matmul %79, %81, %cst_53 {dimension_numbers = #tpu.dot_dimension_numbers<[1], [0], [0], [1], [0, 0, 1, 1], [], []>} : vector<16x8xbf16>, vector<8x16xbf16>, vector<16x16xf32> -> vector<16x16xf32>
    %83 = arith.addf %71, %82 : vector<16x16xf32>
    %84 = vector.extract_strided_slice %3 {offsets = [2, 0, 0], sizes = [2, 2, 16], strides = [1, 1, 1]} : vector<4x4x16xbf16> to vector<2x2x16xbf16>
    %85 = vector.shape_cast %84 : vector<2x2x16xbf16> to vector<4x16xbf16>
    %c6_54 = arith.constant 6 : index
    %c0_55 = arith.constant 0 : index
    %c0_56 = arith.constant 0 : index
    %86 = vector.load %arg4[%c6_54, %c0_55, %c0_56] : memref<9x16x16xbf16, #tpu.memory_space<vmem>>, vector<1x16x16xbf16>
    %87 = vector.shape_cast %86 : vector<1x16x16xbf16> to vector<16x16xbf16>
    %cst_57 = arith.constant dense<0.000000e+00> : vector<4x16xf32>
    %88 = tpu.matmul %85, %87, %cst_57 {dimension_numbers = #tpu.dot_dimension_numbers<[1], [0], [0], [1], [0, 0, 1, 1], [], []>} : vector<4x16xbf16>, vector<16x16xbf16>, vector<4x16xf32> -> vector<4x16xf32>
    %89 = arith.addf %77, %88 : vector<4x16xf32>
    %90 = vector.extract_strided_slice %1 {offsets = [2, 1, 0], sizes = [4, 4, 8], strides = [1, 1, 1]} : vector<6x6x8xbf16> to vector<4x4x8xbf16>
    %91 = vector.shape_cast %90 : vector<4x4x8xbf16> to vector<16x8xbf16>
    %c7 = arith.constant 7 : index
    %c0_58 = arith.constant 0 : index
    %c0_59 = arith.constant 0 : index
    %92 = vector.load %arg3[%c7, %c0_58, %c0_59] : memref<9x8x16xbf16, #tpu.memory_space<vmem>>, vector<1x8x16xbf16>
    %93 = vector.shape_cast %92 : vector<1x8x16xbf16> to vector<8x16xbf16>
    %cst_60 = arith.constant dense<0.000000e+00> : vector<16x16xf32>
    %94 = tpu.matmul %91, %93, %cst_60 {dimension_numbers = #tpu.dot_dimension_numbers<[1], [0], [0], [1], [0, 0, 1, 1], [], []>} : vector<16x8xbf16>, vector<8x16xbf16>, vector<16x16xf32> -> vector<16x16xf32>
    %95 = arith.addf %83, %94 : vector<16x16xf32>
    %96 = vector.extract_strided_slice %3 {offsets = [2, 1, 0], sizes = [2, 2, 16], strides = [1, 1, 1]} : vector<4x4x16xbf16> to vector<2x2x16xbf16>
    %97 = vector.shape_cast %96 : vector<2x2x16xbf16> to vector<4x16xbf16>
    %c7_61 = arith.constant 7 : index
    %c0_62 = arith.constant 0 : index
    %c0_63 = arith.constant 0 : index
    %98 = vector.load %arg4[%c7_61, %c0_62, %c0_63] : memref<9x16x16xbf16, #tpu.memory_space<vmem>>, vector<1x16x16xbf16>
    %99 = vector.shape_cast %98 : vector<1x16x16xbf16> to vector<16x16xbf16>
    %cst_64 = arith.constant dense<0.000000e+00> : vector<4x16xf32>
    %100 = tpu.matmul %97, %99, %cst_64 {dimension_numbers = #tpu.dot_dimension_numbers<[1], [0], [0], [1], [0, 0, 1, 1], [], []>} : vector<4x16xbf16>, vector<16x16xbf16>, vector<4x16xf32> -> vector<4x16xf32>
    %101 = arith.addf %89, %100 : vector<4x16xf32>
    %102 = vector.extract_strided_slice %1 {offsets = [2, 2, 0], sizes = [4, 4, 8], strides = [1, 1, 1]} : vector<6x6x8xbf16> to vector<4x4x8xbf16>
    %103 = vector.shape_cast %102 : vector<4x4x8xbf16> to vector<16x8xbf16>
    %c8 = arith.constant 8 : index
    %c0_65 = arith.constant 0 : index
    %c0_66 = arith.constant 0 : index
    %104 = vector.load %arg3[%c8, %c0_65, %c0_66] : memref<9x8x16xbf16, #tpu.memory_space<vmem>>, vector<1x8x16xbf16>
    %105 = vector.shape_cast %104 : vector<1x8x16xbf16> to vector<8x16xbf16>
    %cst_67 = arith.constant dense<0.000000e+00> : vector<16x16xf32>
    %106 = tpu.matmul %103, %105, %cst_67 {dimension_numbers = #tpu.dot_dimension_numbers<[1], [0], [0], [1], [0, 0, 1, 1], [], []>} : vector<16x8xbf16>, vector<8x16xbf16>, vector<16x16xf32> -> vector<16x16xf32>
    %107 = arith.addf %95, %106 : vector<16x16xf32>
    %108 = vector.extract_strided_slice %3 {offsets = [2, 2, 0], sizes = [2, 2, 16], strides = [1, 1, 1]} : vector<4x4x16xbf16> to vector<2x2x16xbf16>
    %109 = vector.shape_cast %108 : vector<2x2x16xbf16> to vector<4x16xbf16>
    %c8_68 = arith.constant 8 : index
    %c0_69 = arith.constant 0 : index
    %c0_70 = arith.constant 0 : index
    %110 = vector.load %arg4[%c8_68, %c0_69, %c0_70] : memref<9x16x16xbf16, #tpu.memory_space<vmem>>, vector<1x16x16xbf16>
    %111 = vector.shape_cast %110 : vector<1x16x16xbf16> to vector<16x16xbf16>
    %cst_71 = arith.constant dense<0.000000e+00> : vector<4x16xf32>
    %112 = tpu.matmul %109, %111, %cst_71 {dimension_numbers = #tpu.dot_dimension_numbers<[1], [0], [0], [1], [0, 0, 1, 1], [], []>} : vector<4x16xbf16>, vector<16x16xbf16>, vector<4x16xf32> -> vector<4x16xf32>
    %113 = arith.addf %101, %112 : vector<4x16xf32>
    %c0_72 = arith.constant 0 : index
    %c0_73 = arith.constant 0 : index
    %114 = vector.load %arg5[%c0_72, %c0_73] : memref<16x4xf32, #tpu.memory_space<vmem>>, vector<16x4xf32>
    %cst_74 = arith.constant dense<0.000000e+00> : vector<16x16xf32>
    %115 = tpu.matmul %114, %113, %cst_74 {dimension_numbers = #tpu.dot_dimension_numbers<[1], [0], [0], [1], [0, 0, 1, 1], [], []>} : vector<16x4xf32>, vector<4x16xf32>, vector<16x16xf32> -> vector<16x16xf32>
    %116 = arith.addf %107, %115 : vector<16x16xf32>
    %c0_75 = arith.constant 0 : index
    %c0_76 = arith.constant 0 : index
    %117 = vector.load %arg6[%c0_75, %c0_76] : memref<1x16xf32, #tpu.memory_space<vmem>>, vector<1x16xf32>
    %118 = vector.broadcast %117 : vector<1x16xf32> to vector<16x16xf32>
    %119 = arith.addf %116, %118 : vector<16x16xf32>
    %c0_77 = arith.constant 0 : index
    %c0_78 = arith.constant 0 : index
    %c0_79 = arith.constant 0 : index
    %120 = vector.load %arg7[%c0_77, %c0_78, %c0_79] : memref<1x16x16xf32, #tpu.memory_space<vmem>>, vector<1x16x16xf32>
    %121 = vector.shape_cast %120 : vector<1x16x16xf32> to vector<16x16xf32>
    %122 = vector.shape_cast %119 : vector<16x16xf32> to vector<1x16x16xf32>
    tpu.vector_store %arg7[%c0_77, %c0_78, %c0_79], %122 {strides = array<i32>} : memref<1x16x16xf32, #tpu.memory_space<vmem>>, vector<1x16x16xf32>,
    return
  }
  func.func @transform_0(%arg0: i32) -> (i32, i32, i32, i32) {
    %c0_i32 = arith.constant 0 : i32
    %c0_i32_0 = arith.constant 0 : i32
    %c0_i32_1 = arith.constant 0 : i32
    %c0_i32_2 = arith.constant 0 : i32
    return %arg0, %c0_i32, %c0_i32_0, %c0_i32_1 : i32, i32, i32, i32
  }
  func.func @transform_1(%arg0: i32) -> (i32, i32, i32, i32) {
    %c0_i32 = arith.constant 0 : i32
    %c0_i32_0 = arith.constant 0 : i32
    %c0_i32_1 = arith.constant 0 : i32
    %c0_i32_2 = arith.constant 0 : i32
    return %arg0, %c0_i32, %c0_i32_0, %c0_i32_1 : i32, i32, i32, i32
  }
  func.func @transform_2(%arg0: i32) -> (i32, i32, i32) {
    %c0_i32 = arith.constant 0 : i32
    %c0_i32_0 = arith.constant 0 : i32
    %c0_i32_1 = arith.constant 0 : i32
    %c0_i32_2 = arith.constant 0 : i32
    return %c0_i32, %c0_i32_0, %c0_i32_1 : i32, i32, i32
  }
  func.func @transform_3(%arg0: i32) -> (i32, i32, i32) {
    %c0_i32 = arith.constant 0 : i32
    %c0_i32_0 = arith.constant 0 : i32
    %c0_i32_1 = arith.constant 0 : i32
    %c0_i32_2 = arith.constant 0 : i32
    return %c0_i32, %c0_i32_0, %c0_i32_1 : i32, i32, i32
  }
  func.func @transform_4(%arg0: i32) -> (i32, i32) {
    %c0_i32 = arith.constant 0 : i32
    %c0_i32_0 = arith.constant 0 : i32
    %c0_i32_1 = arith.constant 0 : i32
    return %c0_i32, %c0_i32_0 : i32, i32
  }
  func.func @transform_5(%arg0: i32) -> (i32, i32) {
    %c0_i32 = arith.constant 0 : i32
    %c0_i32_0 = arith.constant 0 : i32
    %c0_i32_1 = arith.constant 0 : i32
    return %c0_i32, %c0_i32_0 : i32, i32
  }
  func.func @transform_6(%arg0: i32) -> (i32, i32, i32) {
    %c0_i32 = arith.constant 0 : i32
    %c0_i32_0 = arith.constant 0 : i32
    %c0_i32_1 = arith.constant 0 : i32
    return %arg0, %c0_i32, %c0_i32_0 : i32, i32, i32
  }
}

</mosaic_0001>

<llo_original>
// kernel: tpu_custom_call.1
$region0: #{tpu_custom_call.1}
  #allocation0 [shape = 'u32[]', space=smem, size = 0x4, offset = 0x4, fixed_abs, tag = 'smem constant byte address 0x4 - core index']
  #allocation1 [shape = 'u32[144,128]{1,0:T(1,128)}', space=vmem, size = 0x12000, scoped, tag = 'internal scratch']
  %s0 = inlined_call_operand.vmem [shape: bf16[2,6,6,8], index: 0, kind: input, shape index: {}]
  %s1 = inlined_call_operand.hbm [shape: bf16[2,4,4,16], index: 1, kind: input, shape index: {}]
  %s2 = inlined_call_operand.vmem [shape: bf16[9,8,16], index: 2, kind: input, shape index: {}]
  %s3 = inlined_call_operand.vmem [shape: bf16[9,16,16], index: 3, kind: input, shape index: {}]
  %s4 = inlined_call_operand.vmem [shape: f32[16,4], index: 4, kind: input, shape index: {}]
  %s5 = inlined_call_operand.vmem [shape: f32[1,16], index: 5, kind: input, shape index: {}]
  %s6 = inlined_call_operand.hbm [shape: f32[2,16,16], index: 6, kind: output, shape index: {}]
  %s7 = sld [smem:[#allocation0]]
  $region61: #{tpu_custom_call.1} parent=0
    _
  %s9 = ssub.s32 1, %s7
  %s10 = scalar_select 0, %s9, %s7
  $region1: #{tpu_custom_call.1} parent=0
    #allocation2 [shape = 'u8[8192]{0}', space=vmem, size = 0x2000, scoped, tag = 'input window, operand 1']
    #allocation3 [shape = 's32[2]{0}', space=sflag, size = 0x8, scoped, tag = 'scoped memory for tpu_custom_call.1']
    #allocation4 [shape = 's32[2]{0}', space=sflag, size = 0x8, scoped, tag = 'scoped memory for tpu_custom_call.1']
    #allocation5 [shape = 'u8[16384]{0}', space=vmem, size = 0x4000, scoped, tag = 'output window, operand 0']
    %11 = vsyncpa [#allocation3], 0
    %s12 = scalar_lea.sflag [#allocation3], 1
    %13 = vsyncpa %s12, 0
    %14 = vsyncpa [#allocation4], 0
    %s15 = scalar_lea.sflag [#allocation4], 1
    %16 = vsyncpa %s15, 0
    loop: start=0, step=1, limit=4
    $region2: #{tpu_custom_call.1} parent=1 // loop_pre_header
      _
    $region3: #{tpu_custom_call.1} parent=1 // loop_header
      %s18 = sphi 0, %s22
      %p19 = scmp.ge.s32.totalorder %s18, 4
      %s28 = sphi 0, %s30
      %s31 = sphi 0, %s28
      %s32 = sphi 0, %s31
      %s48 = sphi 0, %s32
      %s54 = sphi 0, %s56
      %s57 = sphi 0, %s54
      %s58 = sphi 0, %s57
      %s74 = sphi 0, %s58
      %s78 = sphi 0, %s78
      %s80 = sphi 0, %s78
      %s81 = sphi 0, %s80
      %s95 = sphi 0, %s81
      %s99 = sphi 0, %s99
      %s101 = sphi 0, %s99
      %s102 = sphi 0, %s101
      %s116 = sphi 0, %s102
      %s120 = sphi 0, %s120
      %s122 = sphi 0, %s120
      %s123 = sphi 0, %s122
      %s137 = sphi 0, %s123
      %s141 = sphi 0, %s141
      %s143 = sphi 0, %s141
      %s144 = sphi 0, %s143
      %s158 = sphi 0, %s144
      %s164 = sphi 0, %s166
      %s167 = sphi 0, %s164
      %s168 = sphi 0, %s167
      %s184 = sphi 0, %s168
    $region4: #{tpu_custom_call.1} parent=1 // loop_header_branch
      %21 = sbr.rel (%p19) target = $region8
    $region5: #{tpu_custom_call.1} parent=1 // loop_body
      %s23 = ssub.s32 %s18, 1
      %s24 = ssub.s32 %s18, 2
      %s25 = sadd.s32 %s18, 1
      %s26 = ssub.s32 %s18, %s25
      %p27 = scmp.eq.s32.totalorder %s26, 0
      %s29 = sadd.s32 %s28, 1
      %s30 = scalar_select %p27, %s28, %s29
      %p33 = pneg %p27
      %p34 = scmp.eq.s32.totalorder %s18, 1
      %p35 = por %p33, %p34
      %p36 = scmp.ne.s32.totalorder %s28, %s31
      %p37 = scmp.eq.s32.totalorder %s18, 0
      %p38 = por %p36, %p37
      %p39 = scmp.ne.s32.totalorder %s28, %s31
      %p40 = scmp.eq.s32.totalorder %s23, 1
      %p41 = por %p39, %p40
      %p42 = scmp.ne.s32.totalorder %s31, %s32
      %p43 = scmp.eq.s32.totalorder %s23, 0
      %p44 = por %p42, %p43
      %p45 = scmp.ne.s32.totalorder %s31, %s32
      %p46 = scmp.eq.s32.totalorder %s24, 1
      %p47 = por %p45, %p46
      %p49 = scmp.ne.s32.totalorder %s32, %s48
      %p50 = scmp.eq.s32.totalorder %s24, 0
      %p51 = por %p49, %p50
      %s52 = ssub.s32 %s18, %s25
      %p53 = scmp.eq.s32.totalorder %s52, 0
      %s55 = sadd.s32 %s54, 1
      %s56 = scalar_select %p53, %s54, %s55
      %p59 = pneg %p53
      %p60 = scmp.eq.s32.totalorder %s18, 1
      %p61 = por %p59, %p60
      %p62 = scmp.ne.s32.totalorder %s54, %s57
      %p63 = scmp.eq.s32.totalorder %s18, 0
      %p64 = por %p62, %p63
      %p65 = scmp.ne.s32.totalorder %s54, %s57
      %p66 = scmp.eq.s32.totalorder %s23, 1
      %p67 = por %p65, %p66
      %p68 = scmp.ne.s32.totalorder %s57, %s58
      %p69 = scmp.eq.s32.totalorder %s23, 0
      %p70 = por %p68, %p69
      %p71 = scmp.ne.s32.totalorder %s57, %s58
      %p72 = scmp.eq.s32.totalorder %s24, 1
      %p73 = por %p71, %p72
      %p75 = scmp.ne.s32.totalorder %s58, %s74
      %p76 = scmp.eq.s32.totalorder %s24, 0
      %p77 = por %p75, %p76
      %s79 = sadd.s32 %s78, 1
      %p82 = scmp.eq.s32.totalorder %s18, 1
      %p83 = scmp.ne.s32.totalorder %s78, %s80
      %p84 = scmp.eq.s32.totalorder %s18, 0
      %p85 = por %p83, %p84
      %p86 = scmp.ne.s32.totalorder %s78, %s80
      %p87 = scmp.eq.s32.totalorder %s23, 1
      %p88 = por %p86, %p87
      %p89 = scmp.ne.s32.totalorder %s80, %s81
      %p90 = scmp.eq.s32.totalorder %s23, 0
      %p91 = por %p89, %p90
      %p92 = scmp.ne.s32.totalorder %s80, %s81
      %p93 = scmp.eq.s32.totalorder %s24, 1
      %p94 = por %p92, %p93
      %p96 = scmp.ne.s32.totalorder %s81, %s95
      %p97 = scmp.eq.s32.totalorder %s24, 0
      %p98 = por %p96, %p97
      %s100 = sadd.s32 %s99, 1
      %p103 = scmp.eq.s32.totalorder %s18, 1
      %p104 = scmp.ne.s32.totalorder %s99, %s101
      %p105 = scmp.eq.s32.totalorder %s18, 0
      %p106 = por %p104, %p105
      %p107 = scmp.ne.s32.totalorder %s99, %s101
      %p108 = scmp.eq.s32.totalorder %s23, 1
      %p109 = por %p107, %p108
      %p110 = scmp.ne.s32.totalorder %s101, %s102
      %p111 = scmp.eq.s32.totalorder %s23, 0
      %p112 = por %p110, %p111
      %p113 = scmp.ne.s32.totalorder %s101, %s102
      %p114 = scmp.eq.s32.totalorder %s24, 1
      %p115 = por %p113, %p114
      %p117 = scmp.ne.s32.totalorder %s102, %s116
      %p118 = scmp.eq.s32.totalorder %s24, 0
      %p119 = por %p117, %p118
      %s121 = sadd.s32 %s120, 1
      %p124 = scmp.eq.s32.totalorder %s18, 1
      %p125 = scmp.ne.s32.totalorder %s120, %s122
      %p126 = scmp.eq.s32.totalorder %s18, 0
      %p127 = por %p125, %p126
      %p128 = scmp.ne.s32.totalorder %s120, %s122
      %p129 = scmp.eq.s32.totalorder %s23, 1
      %p130 = por %p128, %p129
      %p131 = scmp.ne.s32.totalorder %s122, %s123
      %p132 = scmp.eq.s32.totalorder %s23, 0
      %p133 = por %p131, %p132
      %p134 = scmp.ne.s32.totalorder %s122, %s123
      %p135 = scmp.eq.s32.totalorder %s24, 1
      %p136 = por %p134, %p135
      %p138 = scmp.ne.s32.totalorder %s123, %s137
      %p139 = scmp.eq.s32.totalorder %s24, 0
      %p140 = por %p138, %p139
      %s142 = sadd.s32 %s141, 1
      %p145 = scmp.eq.s32.totalorder %s18, 1
      %p146 = scmp.ne.s32.totalorder %s141, %s143
      %p147 = scmp.eq.s32.totalorder %s18, 0
      %p148 = por %p146, %p147
      %p149 = scmp.ne.s32.totalorder %s141, %s143
      %p150 = scmp.eq.s32.totalorder %s23, 1
      %p151 = por %p149, %p150
      %p152 = scmp.ne.s32.totalorder %s143, %s144
      %p153 = scmp.eq.s32.totalorder %s23, 0
      %p154 = por %p152, %p153
      %p155 = scmp.ne.s32.totalorder %s143, %s144
      %p156 = scmp.eq.s32.totalorder %s24, 1
      %p157 = por %p155, %p156
      %p159 = scmp.ne.s32.totalorder %s144, %s158
      %p160 = scmp.eq.s32.totalorder %s24, 0
      %p161 = por %p159, %p160
      %s162 = ssub.s32 %s18, %s25
      %p163 = scmp.eq.s32.totalorder %s162, 0
      %s165 = sadd.s32 %s164, 1
      %s166 = scalar_select %p163, %s164, %s165
      %p169 = pneg %p163
      %p170 = scmp.eq.s32.totalorder %s18, 1
      %p171 = por %p169, %p170
      %p172 = scmp.ne.s32.totalorder %s164, %s167
      %p173 = scmp.eq.s32.totalorder %s18, 0
      %p174 = por %p172, %p173
      %p175 = scmp.ne.s32.totalorder %s164, %s167
      %p176 = scmp.eq.s32.totalorder %s23, 1
      %p177 = por %p175, %p176
      %p178 = scmp.ne.s32.totalorder %s167, %s168
      %p179 = scmp.eq.s32.totalorder %s23, 0
      %p180 = por %p178, %p179
      %p181 = scmp.ne.s32.totalorder %s167, %s168
      %p182 = scmp.eq.s32.totalorder %s24, 1
      %p183 = por %p181, %p182
      %p185 = scmp.ne.s32.totalorder %s168, %s184
      %p186 = scmp.eq.s32.totalorder %s24, 0
      %p187 = por %p185, %p186
      %p188 = scmp.le.s32.totalorder 1, %s18
      %p189 = scmp.lt.s32.totalorder %s18, 3
      %p190 = pnand %p188, %p189
      %p191 = pneg %p190
      // Predicated region
      $region9: #{tpu_custom_call.1} parent=5 // pred_check
        _
      $region10: #{tpu_custom_call.1} parent=5 // pred_check_branch
        %193 = sbr.rel (%p190) target = $region12
      $region11: #{tpu_custom_call.1} parent=5 // pred_region
        %s194 = ssub.s32 %s18, 1
        // Predicated region
        $region13: #{tpu_custom_call.1} parent=11 // pred_check
          %p195 = pneg %p91
        $region14: #{tpu_custom_call.1} parent=11 // pred_check_branch
          %197 = sbr.rel (%p195) target = $region16
        $region15: #{tpu_custom_call.1} parent=11 // pred_region
          _
        $region16: #{tpu_custom_call.1} parent=11 // pred_fallthru
          _
        // Predicated region
        $region17: #{tpu_custom_call.1} parent=11 // pred_check
          %p198 = pneg %p112
        $region18: #{tpu_custom_call.1} parent=11 // pred_check_branch
          %200 = sbr.rel (%p198) target = $region20
        $region19: #{tpu_custom_call.1} parent=11 // pred_region
          _
        $region20: #{tpu_custom_call.1} parent=11 // pred_fallthru
          _
        // Predicated region
        $region21: #{tpu_custom_call.1} parent=11 // pred_check
          %p201 = pneg %p133
        $region22: #{tpu_custom_call.1} parent=11 // pred_check_branch
          %203 = sbr.rel (%p201) target = $region24
        $region23: #{tpu_custom_call.1} parent=11 // pred_region
          _
        $region24: #{tpu_custom_call.1} parent=11 // pred_fallthru
          _
        // Predicated region
        $region25: #{tpu_custom_call.1} parent=11 // pred_check
          %p204 = pneg %p154
        $region26: #{tpu_custom_call.1} parent=11 // pred_check_branch
          %206 = sbr.rel (%p204) target = $region28
        $region27: #{tpu_custom_call.1} parent=11 // pred_region
          _
        $region28: #{tpu_custom_call.1} parent=11 // pred_fallthru
          _
      $region12: #{tpu_custom_call.1} parent=5 // pred_fallthru
        _
      %p207 = scmp.lt.s32.totalorder %s18, 2
      // Predicated region
      $region29: #{tpu_custom_call.1} parent=5 // pred_check
        %p208 = pneg %p207
      $region30: #{tpu_custom_call.1} parent=5 // pred_check_branch
        %210 = sbr.rel (%p208) target = $region32
      $region31: #{tpu_custom_call.1} parent=5 // pred_region
        // Predicated region
        $region33: #{tpu_custom_call.1} parent=31 // pred_check
          %p211 = pneg %p38
        $region34: #{tpu_custom_call.1} parent=31 // pred_check_branch
          %213 = sbr.rel (%p211) target = $region36
        $region35: #{tpu_custom_call.1} parent=31 // pred_region
          %p214 = scmp.lt.s32.totalorder %s18, 1
          %s215 = scalar_select %p214, %s18, 1
          %s216 = smul.addr %s215, 6
          %s217 = smul.addr %s216, 4
          %s218 = scalar_lea.vmem %s0, %s217
        $region36: #{tpu_custom_call.1} parent=31 // pred_fallthru
          _
        // Predicated region
        $region37: #{tpu_custom_call.1} parent=31 // pred_check
          %p219 = pneg %p64
        $region38: #{tpu_custom_call.1} parent=31 // pred_check_branch
          %221 = sbr.rel (%p219) target = $region40
        $region39: #{tpu_custom_call.1} parent=31 // pred_region
          %s222 = sand.u32 %s54, 1
          %s223 = scalar_lea.sflag [#allocation3], %s222
          %s224 = sand.u32 %s54, 1
          %s225 = smul.addr %s224, 8
          %s226 = scalar_lea.vmem [#allocation2], %s225
          %s228 = ssub.s32 128, 128
          %229 = vsyncadd %s223, %s228
          %s230 = smul.addr %s18, 4
          %s231 = smul.addr %s230, 32
          %s232 = scalar_lea.hbm %s1, %s231
          %s233 = sshll.u32 %s226, 4
          %s234 = int_to_ptr.vmem [resolvable:$true] %s233
          %239 = dma.hbm_to_vmem [thread:$0]  %s232, 128, %s234, %s223, 32, 32, 2
        $region40: #{tpu_custom_call.1} parent=31 // pred_fallthru
          _
      $region32: #{tpu_custom_call.1} parent=5 // pred_fallthru
        _
      %p240 = scmp.le.s32.totalorder 1, %s18
      %p241 = scmp.lt.s32.totalorder %s18, 3
      %p242 = pnand %p240, %p241
      %p243 = pneg %p242
      // Predicated region
      $region41: #{tpu_custom_call.1} parent=5 // pred_check
        _
      $region42: #{tpu_custom_call.1} parent=5 // pred_check_branch
        %245 = sbr.rel (%p242) target = $region44
      $region43: #{tpu_custom_call.1} parent=5 // pred_region
        %s246 = ssub.s32 %s18, 1
        %s247 = sand.u32 %s57, 1
        %s248 = scalar_lea.sflag [#allocation3], %s247
        %s249 = sand.u32 %s57, 1
        %s250 = smul.addr %s249, 8
        %s251 = scalar_lea.vmem [#allocation2], %s250
        // Predicated region
        $region45: #{tpu_custom_call.1} parent=43 // pred_check
          %p252 = pneg %p70
        $region46: #{tpu_custom_call.1} parent=43 // pred_check_branch
          %254 = sbr.rel (%p252) target = $region48
        $region47: #{tpu_custom_call.1} parent=43 // pred_region
          %255 = dma.done %s248, 128
        $region48: #{tpu_custom_call.1} parent=43 // pred_fallthru
          _
        %p256 = scmp.lt.s32.totalorder %s23, 1
        %s257 = scalar_select %p256, %s23, 1
        %s258 = smul.addr %s257, 6
        %s259 = smul.addr %s258, 4
        %s260 = scalar_lea.vmem %s0, %s259
        %p261 = pneg %p44
        %p262 = pneg %p41
        %s263 = sand.u32 %s57, 1
        %s264 = scalar_lea.sflag [#allocation3], %s263
        %s265 = sand.u32 %s57, 1
        %s266 = smul.addr %s265, 8
        %s267 = scalar_lea.vmem [#allocation2], %s266
        %p268 = pneg %p70
        %p269 = pneg %p67
        %p270 = pneg %p91
        %p271 = pneg %p88
        %p272 = pneg %p112
        %p273 = pneg %p109
        %p274 = pneg %p133
        %p275 = pneg %p130
        %p276 = pneg %p154
        %p277 = pneg %p151
        %p278 = pneg %p180
        %p279 = pneg %p177
        %s280 = sand.u32 %s167, 1
        %s281 = scalar_lea.sflag [#allocation4], %s280
        %s282 = sand.u32 %s167, 1
        %s283 = smul.addr %s282, 16
        %s284 = scalar_lea.vmem [#allocation5], %s283
        %p285 = scmp.lt.s32.totalorder %s23, 1
        %s286 = scalar_select %p285, %s23, 1
        %s287 = smul.addr %s286, 6
        %s288 = smul.addr %s287, 4
        %s289 = scalar_lea.vmem %s0, %s288
        %v291 = vld [vmem:[%s289] sm:$0x7]
        %v292 = vld [vmem:[%s289 + $0x4] sm:$0x7]
        %v293 = vld [vmem:[%s289 + $0x8] sm:$0x7]
        %v294 = vld [vmem:[%s289 + $0xc] sm:$0x7]
        %v295 = vld [vmem:[%s289 + $0x10] sm:$0x7]
        %v296 = vld [vmem:[%s289 + $0x14] sm:$0x7]
        %v297 = vld [vmem:[%s251] sm:$0x3]
        %v298 = vld [vmem:[%s251 + $0x2] sm:$0x3]
        %v299 = vld [vmem:[%s251 + $0x4] sm:$0x3]
        %v300 = vld [vmem:[%s251 + $0x6] sm:$0x3]
        %v301 = vld [vmem:[%s2] sm:$0xf]
        %v302 = vld [vmem:[%s3] sm:$0xf]
        %v303 = vld [vmem:[%s3 + $0x4] sm:$0xf]
        %v309 = vunpack.c.l.s4 1983009808
        %v310 = vunpack.c.0.s8 %v309
        %v311 = vlaneseq
        %v312 = vshrl.u32 %v311, 7
        %v313 = vsub.s32 %v310, %v312
        %v314 = vrot.slane %v291, %v313
        %v315 = vcombine.high %v314, %v314
        %v317 = vunpack.c.l.s4 1983009808
        %v318 = vunpack.c.0.s8 %v317
        %v319 = vlaneseq
        %v320 = vshrl.u32 %v319, 7
        %v321 = vsub.s32 %v318, %v320
        %v322 = vrot.slane %v292, %v321
        %v323 = vcombine.high %v322, %v322
        %v325 = vunpack.c.l.s4 1983009808
        %v326 = vunpack.c.0.s8 %v325
        %v327 = vlaneseq
        %v328 = vshrl.u32 %v327, 7
        %v329 = vsub.s32 %v326, %v328
        %v330 = vrot.slane %v293, %v329
        %v331 = vcombine.high %v330, %v330
        %v333 = vunpack.c.l.s4 1983009808
        %v334 = vunpack.c.0.s8 %v333
        %v335 = vlaneseq
        %v336 = vshrl.u32 %v335, 7
        %v337 = vsub.s32 %v334, %v336
        %v338 = vrot.slane %v294, %v337
        %v339 = vcombine.high %v338, %v338
        %vm340 = vsmask.f32 1280
        %vm341 = vsmask.f32 3336
        %vm342 = vmor %vm340, %vm341
        %vm343 = vsmask.f32 5392
        %vm344 = vmor %vm342, %vm343
        %vm345 = vsmask.f32 7448
        %vm346 = vmor %vm344, %vm345
        %v348 = vshrl.u32 %v314, 16
        %v350 = vrot.slane %v348, 6
        %v351 = vshll.u32 %v314, 16
        %v353 = vrot.slane %v351, 7
        %v354 = vor.u32 %v350, %v353
        %v355 = vrot.slane %v354, 2
        %v357 = vshll.u32 %v315, 16
        %v359 = vrot.slane %v357, 7
        %v360 = vsel %vm346, %v355, %v359
        %v362 = vshrl.u32 %v322, 16
        %v364 = vrot.slane %v362, 6
        %v365 = vshll.u32 %v322, 16
        %v367 = vrot.slane %v365, 7
        %v368 = vor.u32 %v364, %v367
        %v369 = vrot.slane %v368, 2
        %v371 = vshll.u32 %v323, 16
        %v373 = vrot.slane %v371, 7
        %v374 = vsel %vm346, %v369, %v373
        %v376 = vshrl.u32 %v330, 16
        %v378 = vrot.slane %v376, 6
        %v379 = vshll.u32 %v330, 16
        %v381 = vrot.slane %v379, 7
        %v382 = vor.u32 %v378, %v381
        %v383 = vrot.slane %v382, 2
        %v385 = vshll.u32 %v331, 16
        %v387 = vrot.slane %v385, 7
        %v388 = vsel %vm346, %v383, %v387
        %v390 = vshrl.u32 %v338, 16
        %v392 = vrot.slane %v390, 6
        %v393 = vshll.u32 %v338, 16
        %v395 = vrot.slane %v393, 7
        %v396 = vor.u32 %v392, %v395
        %v397 = vrot.slane %v396, 2
        %v399 = vshll.u32 %v339, 16
        %v401 = vrot.slane %v399, 7
        %v402 = vsel %vm346, %v397, %v401
        %s403 = scalar_lea.vmem %s2, 4
        %v404 = vld [vmem:[%s403] sm:$0xf]
        %v405 = vcombine.low %v360, %v374
        %v406 = vcombine.low %v388, %v402
        %v408 = vunpack.c.l.s4 1983009808
        %v409 = vunpack.c.0.s8 %v408
        %v410 = vlaneseq
        %v411 = vshrl.u32 %v410, 7
        %v412 = vsub.s32 %v409, %v411
        %v413 = vrot.slane %v405, %v412
        %v415 = vunpack.c.l.s4 1983009808
        %v416 = vunpack.c.0.s8 %v415
        %v417 = vlaneseq
        %v418 = vshrl.u32 %v417, 7
        %v419 = vsub.s32 %v416, %v418
        %v420 = vrot.slane %v406, %v419
        %v421 = vcombine.low %v413, %v420
        %vm422 = vcmask 64512
        %v424 = vsel %vm422, %v421, 0
        %vm426 = vcmask 1043456
        %v428 = vsel %vm426, %v404, 0
        %430 = vmatprep.subr.bf16.mxu0 0
        %431 = vmatpush1.bf16.msra.mxu0 %v428
        %432 = vmatprep.subr.bf16.mxu0 0
        %433 = vmatpush1.bf16.msra.mxu0 0
        %434 = vmatprep.subr.bf16.mxu0 0
        %435 = vmatpush1.bf16.msra.mxu0 0
        %436 = vmatprep.subr.bf16.mxu0 0
        %437 = vmatpush1.bf16.msra.mxu0 0
        %438 = vmatprep.subr.bf16.mxu0 0
        %439 = vmatpush1.bf16.msra.mxu0 0
        %440 = vmatprep.subr.bf16.mxu0 0
        %441 = vmatpush1.bf16.msra.mxu0 0
        %442 = vmatprep.subr.bf16.mxu0 0
        %443 = vmatpush1.bf16.msra.mxu0 0
        %444 = vmatprep.subr.bf16.mxu0 0
        %445 = vmatpush1.bf16.msra.mxu0 0
        %446 = vmatprep.subr.bf16.mxu0 0
        %447 = vmatpush1.bf16.msra.mxu0 0
        %448 = vmatprep.subr.bf16.mxu0 0
        %449 = vmatpush1.bf16.msra.mxu0 0
        %450 = vmatprep.subr.bf16.mxu0 0
        %451 = vmatpush1.bf16.msra.mxu0 0
        %452 = vmatprep.subr.bf16.mxu0 0
        %453 = vmatpush1.bf16.msra.mxu0 0
        %454 = vmatprep.subr.bf16.mxu0 0
        %455 = vmatpush1.bf16.msra.mxu0 0
        %456 = vmatprep.subr.bf16.mxu0 0
        %457 = vmatpush1.bf16.msra.mxu0 0
        %458 = vmatprep.subr.bf16.mxu0 0
        %459 = vmatpush1.bf16.msra.mxu0 0
        %460 = vmatprep.subr.bf16.mxu0 0
        %461 = vmatpush1.bf16.msra.mxu0 0
        %462 = vmatprep.mubr.bf16.mxu0 0
        %463 = vmatmul.mubr.bf16.gmra.mrb[0].mxu0 %v424
        %v464 = vpop.f32.mrb[0].mxu0
        %v465 = vadd.f32 0.0, %v464
        %v466 = vpop.f32.mrb[0].mxu0
        %v467 = vpop.f32.mrb[0].mxu0
        %v468 = vadd.f32 0.0, %v467
        %v469 = vpop.f32.mrb[0].mxu0
        %470 = vdwg.mxu0
        %v471 = vcombine.low %v291, %v292
        %v472 = vcombine.low %v293, %v294
        %v474 = vunpack.c.l.s4 1983009808
        %v475 = vunpack.c.0.s8 %v474
        %v476 = vlaneseq
        %v477 = vshrl.u32 %v476, 7
        %v478 = vsub.s32 %v475, %v477
        %v479 = vrot.slane %v471, %v478
        %v481 = vunpack.c.l.s4 1983009808
        %v482 = vunpack.c.0.s8 %v481
        %v483 = vlaneseq
        %v484 = vshrl.u32 %v483, 7
        %v485 = vsub.s32 %v482, %v484
        %v486 = vrot.slane %v472, %v485
        %v487 = vcombine.low %v479, %v486
        %v489 = vsel %vm422, %v487, 0
        %v492 = vsel %vm426, %v301, 0
        %494 = vmatprep.subr.bf16.mxu0 0
        %495 = vmatpush1.bf16.msra.mxu0 %v492
        %496 = vmatprep.subr.bf16.mxu0 0
        %497 = vmatpush1.bf16.msra.mxu0 0
        %498 = vmatprep.subr.bf16.mxu0 0
        %499 = vmatpush1.bf16.msra.mxu0 0
        %500 = vmatprep.subr.bf16.mxu0 0
        %501 = vmatpush1.bf16.msra.mxu0 0
        %502 = vmatprep.subr.bf16.mxu0 0
        %503 = vmatpush1.bf16.msra.mxu0 0
        %504 = vmatprep.subr.bf16.mxu0 0
        %505 = vmatpush1.bf16.msra.mxu0 0
        %506 = vmatprep.subr.bf16.mxu0 0
        %507 = vmatpush1.bf16.msra.mxu0 0
        %508 = vmatprep.subr.bf16.mxu0 0
        %509 = vmatpush1.bf16.msra.mxu0 0
        %510 = vmatprep.subr.bf16.mxu0 0
        %511 = vmatpush1.bf16.msra.mxu0 0
        %512 = vmatprep.subr.bf16.mxu0 0
        %513 = vmatpush1.bf16.msra.mxu0 0
        %514 = vmatprep.subr.bf16.mxu0 0
        %515 = vmatpush1.bf16.msra.mxu0 0
        %516 = vmatprep.subr.bf16.mxu0 0
        %517 = vmatpush1.bf16.msra.mxu0 0
        %518 = vmatprep.subr.bf16.mxu0 0
        %519 = vmatpush1.bf16.msra.mxu0 0
        %520 = vmatprep.subr.bf16.mxu0 0
        %521 = vmatpush1.bf16.msra.mxu0 0
        %522 = vmatprep.subr.bf16.mxu0 0
        %523 = vmatpush1.bf16.msra.mxu0 0
        %524 = vmatprep.subr.bf16.mxu0 0
        %525 = vmatpush1.bf16.msra.mxu0 0
        %526 = vmatprep.mubr.bf16.mxu0 0
        %527 = vmatmul.mubr.bf16.gmra.mrb[0].mxu0 %v489
        %v528 = vpop.f32.mrb[0].mxu0
        %v529 = vadd.f32 %v465, %v528
        %v530 = vpop.f32.mrb[0].mxu0
        %v531 = vpop.f32.mrb[0].mxu0
        %v532 = vadd.f32 %v468, %v531
        %v533 = vpop.f32.mrb[0].mxu0
        %534 = vdwg.mxu0
        %v538 = vunpack.c.l.s4 1966171168
        %v539 = vunpack.c.0.s8 %v538
        %v540 = vlaneseq
        %v541 = vshrl.u32 %v540, 7
        %v542 = vsub.s32 %v539, %v541
        %v543 = vrot.slane %v297, %v542
        %v544 = vcombine.high %v543, %v543
        %v546 = vunpack.c.l.s4 1966171168
        %v547 = vunpack.c.0.s8 %v546
        %v548 = vlaneseq
        %v549 = vshrl.u32 %v548, 7
        %v550 = vsub.s32 %v547, %v549
        %v551 = vrot.slane %v298, %v550
        %v552 = vcombine.high %v551, %v551
        %vm553 = vsmask.f32 256
        %vm554 = vsmask.f32 1284
        %vm555 = vmor %vm553, %vm554
        %vm556 = vsmask.f32 2312
        %vm557 = vmor %vm555, %vm556
        %vm558 = vsmask.f32 3340
        %vm559 = vmor %vm557, %vm558
        %vm560 = vsmask.f32 4368
        %vm561 = vmor %vm559, %vm560
        %vm562 = vsmask.f32 5396
        %vm563 = vmor %vm561, %vm562
        %vm564 = vsmask.f32 6424
        %vm565 = vmor %vm563, %vm564
        %vm566 = vsmask.f32 7452
        %vm567 = vmor %vm565, %vm566
        %v569 = vshrl.u32 %v543, 16
        %v571 = vrot.slane %v569, 7
        %v572 = vrot.slane %v571, 1
        %v574 = vshll.u32 %v544, 16
        %v576 = vsel %vm567, %v572, %v574
        %v578 = vshrl.u32 %v551, 16
        %v580 = vrot.slane %v578, 7
        %v581 = vrot.slane %v580, 1
        %v583 = vshll.u32 %v552, 16
        %v585 = vsel %vm567, %v581, %v583
        %s586 = scalar_lea.vmem %s3, 8
        %v587 = vld [vmem:[%s586] sm:$0xf]
        %v588 = vld [vmem:[%s586 + $0x4] sm:$0xf]
        %v589 = vcombine.low %v576, %v585
        %v591 = vunpack.c.l.s4 1966171168
        %v592 = vunpack.c.0.s8 %v591
        %v593 = vlaneseq
        %v594 = vshrl.u32 %v593, 7
        %v595 = vsub.s32 %v592, %v594
        %v596 = vrot.slane %v589, %v595
        %v598 = vunpack.c.l.s4 1966171168
        %v599 = vunpack.c.0.s8 %v598
        %v600 = vlaneseq
        %v601 = vshrl.u32 %v600, 7
        %v602 = vsub.s32 %v599, %v601
        %v603 = vrot.slane %v596, %v602
        %v606 = vunpack.c.l.b16 %v587
        %v607 = vunpack.c.l.b16 %v588
        %v608 = vpack.c.b16 %v607, %v606
        %vm610 = vcmask 130048
        %v612 = vsel %vm610, %v603, 0
        %614 = vmatprep.subr.bf16.mxu0 0
        %615 = vmatpush1.bf16.msra.mxu0 %v608
        %616 = vmatprep.subr.bf16.mxu0 0
        %617 = vmatpush1.bf16.msra.mxu0 0
        %618 = vmatprep.subr.bf16.mxu0 0
        %619 = vmatpush1.bf16.msra.mxu0 0
        %620 = vmatprep.subr.bf16.mxu0 0
        %621 = vmatpush1.bf16.msra.mxu0 0
        %622 = vmatprep.subr.bf16.mxu0 0
        %623 = vmatpush1.bf16.msra.mxu0 0
        %624 = vmatprep.subr.bf16.mxu0 0
        %625 = vmatpush1.bf16.msra.mxu0 0
        %626 = vmatprep.subr.bf16.mxu0 0
        %627 = vmatpush1.bf16.msra.mxu0 0
        %628 = vmatprep.subr.bf16.mxu0 0
        %629 = vmatpush1.bf16.msra.mxu0 0
        %630 = vmatprep.subr.bf16.mxu0 0
        %631 = vmatpush1.bf16.msra.mxu0 0
        %632 = vmatprep.subr.bf16.mxu0 0
        %633 = vmatpush1.bf16.msra.mxu0 0
        %634 = vmatprep.subr.bf16.mxu0 0
        %635 = vmatpush1.bf16.msra.mxu0 0
        %636 = vmatprep.subr.bf16.mxu0 0
        %637 = vmatpush1.bf16.msra.mxu0 0
        %638 = vmatprep.subr.bf16.mxu0 0
        %639 = vmatpush1.bf16.msra.mxu0 0
        %640 = vmatprep.subr.bf16.mxu0 0
        %641 = vmatpush1.bf16.msra.mxu0 0
        %642 = vmatprep.subr.bf16.mxu0 0
        %643 = vmatpush1.bf16.msra.mxu0 0
        %644 = vmatprep.subr.bf16.mxu0 0
        %645 = vmatpush1.bf16.msra.mxu0 0
        %646 = vmatprep.mubr.bf16.mxu0 0
        %647 = vmatmul.mubr.bf16.gmra.mrb[0].mxu0 %v612
        %v648 = vpop.f32.mrb[0].mxu0
        %v649 = vadd.f32 0.0, %v648
        %v650 = vpop.f32.mrb[0].mxu0
        %v651 = vpop.f32.mrb[0].mxu0
        %v652 = vpop.f32.mrb[0].mxu0
        %653 = vdwg.mxu0
        %v654 = vcombine.low %v297, %v298
        %v656 = vunpack.c.l.s4 1966171168
        %v657 = vunpack.c.0.s8 %v656
        %v658 = vlaneseq
        %v659 = vshrl.u32 %v658, 7
        %v660 = vsub.s32 %v657, %v659
        %v661 = vrot.slane %v654, %v660
        %v663 = vunpack.c.l.s4 1966171168
        %v664 = vunpack.c.0.s8 %v663
        %v665 = vlaneseq
        %v666 = vshrl.u32 %v665, 7
        %v667 = vsub.s32 %v664, %v666
        %v668 = vrot.slane %v661, %v667
        %v671 = vunpack.c.l.b16 %v302
        %v672 = vunpack.c.l.b16 %v303
        %v673 = vpack.c.b16 %v672, %v671
        %v676 = vsel %vm610, %v668, 0
        %678 = vmatprep.subr.bf16.mxu0 0
        %679 = vmatpush1.bf16.msra.mxu0 %v673
        %680 = vmatprep.subr.bf16.mxu0 0
        %681 = vmatpush1.bf16.msra.mxu0 0
        %682 = vmatprep.subr.bf16.mxu0 0
        %683 = vmatpush1.bf16.msra.mxu0 0
        %684 = vmatprep.subr.bf16.mxu0 0
        %685 = vmatpush1.bf16.msra.mxu0 0
        %686 = vmatprep.subr.bf16.mxu0 0
        %687 = vmatpush1.bf16.msra.mxu0 0
        %688 = vmatprep.subr.bf16.mxu0 0
        %689 = vmatpush1.bf16.msra.mxu0 0
        %690 = vmatprep.subr.bf16.mxu0 0
        %691 = vmatpush1.bf16.msra.mxu0 0
        %692 = vmatprep.subr.bf16.mxu0 0
        %693 = vmatpush1.bf16.msra.mxu0 0
        %694 = vmatprep.subr.bf16.mxu0 0
        %695 = vmatpush1.bf16.msra.mxu0 0
        %696 = vmatprep.subr.bf16.mxu0 0
        %697 = vmatpush1.bf16.msra.mxu0 0
        %698 = vmatprep.subr.bf16.mxu0 0
        %699 = vmatpush1.bf16.msra.mxu0 0
        %700 = vmatprep.subr.bf16.mxu0 0
        %701 = vmatpush1.bf16.msra.mxu0 0
        %702 = vmatprep.subr.bf16.mxu0 0
        %703 = vmatpush1.bf16.msra.mxu0 0
        %704 = vmatprep.subr.bf16.mxu0 0
        %705 = vmatpush1.bf16.msra.mxu0 0
        %706 = vmatprep.subr.bf16.mxu0 0
        %707 = vmatpush1.bf16.msra.mxu0 0
        %708 = vmatprep.subr.bf16.mxu0 0
        %709 = vmatpush1.bf16.msra.mxu0 0
        %710 = vmatprep.mubr.bf16.mxu0 0
        %711 = vmatmul.mubr.bf16.gmra.mrb[0].mxu0 %v676
        %v712 = vpop.f32.mrb[0].mxu0
        %v713 = vadd.f32 %v649, %v712
        %v714 = vpop.f32.mrb[0].mxu0
        %v715 = vpop.f32.mrb[0].mxu0
        %v716 = vpop.f32.mrb[0].mxu0
        %717 = vdwg.mxu0
        %vm718 = vcmask 1040384
        %vm719 = vcmask 1042434
        %vm720 = vmor %vm718, %vm719
        %vm721 = vcmask 1044484
        %vm722 = vmor %vm720, %vm721
        %vm723 = vcmask 1046534
        %vm724 = vmor %vm722, %vm723
        %v725 = vrot.slane %v314, 7
        %v726 = vrot.slane %v725, 2
        %v727 = vrot.slane %v315, 7
        %v728 = vsel %vm724, %v726, %v727
        %v729 = vrot.slane %v322, 7
        %v730 = vrot.slane %v729, 2
        %v731 = vrot.slane %v323, 7
        %v732 = vsel %vm724, %v730, %v731
        %v733 = vrot.slane %v330, 7
        %v734 = vrot.slane %v733, 2
        %v735 = vrot.slane %v331, 7
        %v736 = vsel %vm724, %v734, %v735
        %v737 = vrot.slane %v338, 7
        %v738 = vrot.slane %v737, 2
        %v739 = vrot.slane %v339, 7
        %v740 = vsel %vm724, %v738, %v739
        %s741 = scalar_lea.vmem %s2, 8
        %v742 = vld [vmem:[%s741] sm:$0xf]
        %v743 = vcombine.low %v728, %v732
        %v744 = vcombine.low %v736, %v740
        %v746 = vunpack.c.l.s4 1983009808
        %v747 = vunpack.c.0.s8 %v746
        %v748 = vlaneseq
        %v749 = vshrl.u32 %v748, 7
        %v750 = vsub.s32 %v747, %v749
        %v751 = vrot.slane %v743, %v750
        %v753 = vunpack.c.l.s4 1983009808
        %v754 = vunpack.c.0.s8 %v753
        %v755 = vlaneseq
        %v756 = vshrl.u32 %v755, 7
        %v757 = vsub.s32 %v754, %v756
        %v758 = vrot.slane %v744, %v757
        %v759 = vcombine.low %v751, %v758
        %v761 = vsel %vm422, %v759, 0
        %v764 = vsel %vm426, %v742, 0
        %766 = vmatprep.subr.bf16.mxu0 0
        %767 = vmatpush1.bf16.msra.mxu0 %v764
        %768 = vmatprep.subr.bf16.mxu0 0
        %769 = vmatpush1.bf16.msra.mxu0 0
        %770 = vmatprep.subr.bf16.mxu0 0
        %771 = vmatpush1.bf16.msra.mxu0 0
        %772 = vmatprep.subr.bf16.mxu0 0
        %773 = vmatpush1.bf16.msra.mxu0 0
        %774 = vmatprep.subr.bf16.mxu0 0
        %775 = vmatpush1.bf16.msra.mxu0 0
        %776 = vmatprep.subr.bf16.mxu0 0
        %777 = vmatpush1.bf16.msra.mxu0 0
        %778 = vmatprep.subr.bf16.mxu0 0
        %779 = vmatpush1.bf16.msra.mxu0 0
        %780 = vmatprep.subr.bf16.mxu0 0
        %781 = vmatpush1.bf16.msra.mxu0 0
        %782 = vmatprep.subr.bf16.mxu0 0
        %783 = vmatpush1.bf16.msra.mxu0 0
        %784 = vmatprep.subr.bf16.mxu0 0
        %785 = vmatpush1.bf16.msra.mxu0 0
        %786 = vmatprep.subr.bf16.mxu0 0
        %787 = vmatpush1.bf16.msra.mxu0 0
        %788 = vmatprep.subr.bf16.mxu0 0
        %789 = vmatpush1.bf16.msra.mxu0 0
        %790 = vmatprep.subr.bf16.mxu0 0
        %791 = vmatpush1.bf16.msra.mxu0 0
        %792 = vmatprep.subr.bf16.mxu0 0
        %793 = vmatpush1.bf16.msra.mxu0 0
        %794 = vmatprep.subr.bf16.mxu0 0
        %795 = vmatpush1.bf16.msra.mxu0 0
        %796 = vmatprep.subr.bf16.mxu0 0
        %797 = vmatpush1.bf16.msra.mxu0 0
        %798 = vmatprep.mubr.bf16.mxu0 0
        %799 = vmatmul.mubr.bf16.gmra.mrb[0].mxu0 %v761
        %v800 = vpop.f32.mrb[0].mxu0
        %v801 = vadd.f32 0.0, %v800
        %v802 = vpop.f32.mrb[0].mxu0
        %v803 = vpop.f32.mrb[0].mxu0
        %v804 = vadd.f32 0.0, %v803
        %v805 = vpop.f32.mrb[0].mxu0
        %806 = vdwg.mxu0
        %v807 = vadd.f32 %v529, %v801
        %v808 = vadd.f32 %v532, %v804
        %s809 = scalar_lea.vmem %s3, 16
        %v810 = vld [vmem:[%s809] sm:$0xf]
        %v811 = vld [vmem:[%s809 + $0x4] sm:$0xf]
        %v812 = vcombine.low %v544, %v552
        %v814 = vunpack.c.l.s4 1966171168
        %v815 = vunpack.c.0.s8 %v814
        %v816 = vlaneseq
        %v817 = vshrl.u32 %v816, 7
        %v818 = vsub.s32 %v815, %v817
        %v819 = vrot.slane %v812, %v818
        %v821 = vunpack.c.l.s4 1966171168
        %v822 = vunpack.c.0.s8 %v821
        %v823 = vlaneseq
        %v824 = vshrl.u32 %v823, 7
        %v825 = vsub.s32 %v822, %v824
        %v826 = vrot.slane %v819, %v825
        %v829 = vunpack.c.l.b16 %v810
        %v830 = vunpack.c.l.b16 %v811
        %v831 = vpack.c.b16 %v830, %v829
        %v834 = vsel %vm610, %v826, 0
        %836 = vmatprep.subr.bf16.mxu0 0
        %837 = vmatpush1.bf16.msra.mxu0 %v831
        %838 = vmatprep.subr.bf16.mxu0 0
        %839 = vmatpush1.bf16.msra.mxu0 0
        %840 = vmatprep.subr.bf16.mxu0 0
        %841 = vmatpush1.bf16.msra.mxu0 0
        %842 = vmatprep.subr.bf16.mxu0 0
        %843 = vmatpush1.bf16.msra.mxu0 0
        %844 = vmatprep.subr.bf16.mxu0 0
        %845 = vmatpush1.bf16.msra.mxu0 0
        %846 = vmatprep.subr.bf16.mxu0 0
        %847 = vmatpush1.bf16.msra.mxu0 0
        %848 = vmatprep.subr.bf16.mxu0 0
        %849 = vmatpush1.bf16.msra.mxu0 0
        %850 = vmatprep.subr.bf16.mxu0 0
        %851 = vmatpush1.bf16.msra.mxu0 0
        %852 = vmatprep.subr.bf16.mxu0 0
        %853 = vmatpush1.bf16.msra.mxu0 0
        %854 = vmatprep.subr.bf16.mxu0 0
        %855 = vmatpush1.bf16.msra.mxu0 0
        %856 = vmatprep.subr.bf16.mxu0 0
        %857 = vmatpush1.bf16.msra.mxu0 0
        %858 = vmatprep.subr.bf16.mxu0 0
        %859 = vmatpush1.bf16.msra.mxu0 0
        %860 = vmatprep.subr.bf16.mxu0 0
        %861 = vmatpush1.bf16.msra.mxu0 0
        %862 = vmatprep.subr.bf16.mxu0 0
        %863 = vmatpush1.bf16.msra.mxu0 0
        %864 = vmatprep.subr.bf16.mxu0 0
        %865 = vmatpush1.bf16.msra.mxu0 0
        %866 = vmatprep.subr.bf16.mxu0 0
        %867 = vmatpush1.bf16.msra.mxu0 0
        %868 = vmatprep.mubr.bf16.mxu0 0
        %869 = vmatmul.mubr.bf16.gmra.mrb[0].mxu0 %v834
        %v870 = vpop.f32.mrb[0].mxu0
        %v871 = vadd.f32 0.0, %v870
        %v872 = vpop.f32.mrb[0].mxu0
        %v873 = vpop.f32.mrb[0].mxu0
        %v874 = vpop.f32.mrb[0].mxu0
        %875 = vdwg.mxu0
        %v876 = vadd.f32 %v713, %v871
        %s877 = scalar_lea.vmem %s2, 12
        %v878 = vld [vmem:[%s877] sm:$0xf]
        %v880 = vcombine.low %v292, %v293
        %v881 = vcombine.low %v294, %v295
        %v883 = vunpack.c.l.s4 1983009808
        %v884 = vunpack.c.0.s8 %v883
        %v885 = vlaneseq
        %v886 = vshrl.u32 %v885, 7
        %v887 = vsub.s32 %v884, %v886
        %v888 = vrot.slane %v880, %v887
        %v890 = vunpack.c.l.s4 1983009808
        %v891 = vunpack.c.0.s8 %v890
        %v892 = vlaneseq
        %v893 = vshrl.u32 %v892, 7
        %v894 = vsub.s32 %v891, %v893
        %v895 = vrot.slane %v881, %v894
        %v896 = vcombine.low %v888, %v895
        %v898 = vsel %vm422, %v896, 0
        %v901 = vsel %vm426, %v878, 0
        %903 = vmatprep.subr.bf16.mxu0 0
        %904 = vmatpush1.bf16.msra.mxu0 %v901
        %905 = vmatprep.subr.bf16.mxu0 0
        %906 = vmatpush1.bf16.msra.mxu0 0
        %907 = vmatprep.subr.bf16.mxu0 0
        %908 = vmatpush1.bf16.msra.mxu0 0
        %909 = vmatprep.subr.bf16.mxu0 0
        %910 = vmatpush1.bf16.msra.mxu0 0
        %911 = vmatprep.subr.bf16.mxu0 0
        %912 = vmatpush1.bf16.msra.mxu0 0
        %913 = vmatprep.subr.bf16.mxu0 0
        %914 = vmatpush1.bf16.msra.mxu0 0
        %915 = vmatprep.subr.bf16.mxu0 0
        %916 = vmatpush1.bf16.msra.mxu0 0
        %917 = vmatprep.subr.bf16.mxu0 0
        %918 = vmatpush1.bf16.msra.mxu0 0
        %919 = vmatprep.subr.bf16.mxu0 0
        %920 = vmatpush1.bf16.msra.mxu0 0
        %921 = vmatprep.subr.bf16.mxu0 0
        %922 = vmatpush1.bf16.msra.mxu0 0
        %923 = vmatprep.subr.bf16.mxu0 0
        %924 = vmatpush1.bf16.msra.mxu0 0
        %925 = vmatprep.subr.bf16.mxu0 0
        %926 = vmatpush1.bf16.msra.mxu0 0
        %927 = vmatprep.subr.bf16.mxu0 0
        %928 = vmatpush1.bf16.msra.mxu0 0
        %929 = vmatprep.subr.bf16.mxu0 0
        %930 = vmatpush1.bf16.msra.mxu0 0
        %931 = vmatprep.subr.bf16.mxu0 0
        %932 = vmatpush1.bf16.msra.mxu0 0
        %933 = vmatprep.subr.bf16.mxu0 0
        %934 = vmatpush1.bf16.msra.mxu0 0
        %935 = vmatprep.mubr.bf16.mxu0 0
        %936 = vmatmul.mubr.bf16.gmra.mrb[0].mxu0 %v898
        %v937 = vpop.f32.mrb[0].mxu0
        %v938 = vadd.f32 0.0, %v937
        %v939 = vpop.f32.mrb[0].mxu0
        %v940 = vpop.f32.mrb[0].mxu0
        %v941 = vadd.f32 0.0, %v940
        %v942 = vpop.f32.mrb[0].mxu0
        %943 = vdwg.mxu0
        %v944 = vadd.f32 %v807, %v938
        %v945 = vadd.f32 %v808, %v941
        %s946 = scalar_lea.vmem %s3, 24
        %v947 = vld [vmem:[%s946] sm:$0xf]
        %v948 = vld [vmem:[%s946 + $0x4] sm:$0xf]
        %v950 = vcombine.low %v298, %v299
        %v952 = vunpack.c.l.s4 1966171168
        %v953 = vunpack.c.0.s8 %v952
        %v954 = vlaneseq
        %v955 = vshrl.u32 %v954, 7
        %v956 = vsub.s32 %v953, %v955
        %v957 = vrot.slane %v950, %v956
        %v959 = vunpack.c.l.s4 1966171168
        %v960 = vunpack.c.0.s8 %v959
        %v961 = vlaneseq
        %v962 = vshrl.u32 %v961, 7
        %v963 = vsub.s32 %v960, %v962
        %v964 = vrot.slane %v957, %v963
        %v967 = vunpack.c.l.b16 %v947
        %v968 = vunpack.c.l.b16 %v948
        %v969 = vpack.c.b16 %v968, %v967
        %v972 = vsel %vm610, %v964, 0
        %974 = vmatprep.subr.bf16.mxu0 0
        %975 = vmatpush1.bf16.msra.mxu0 %v969
        %976 = vmatprep.subr.bf16.mxu0 0
        %977 = vmatpush1.bf16.msra.mxu0 0
        %978 = vmatprep.subr.bf16.mxu0 0
        %979 = vmatpush1.bf16.msra.mxu0 0
        %980 = vmatprep.subr.bf16.mxu0 0
        %981 = vmatpush1.bf16.msra.mxu0 0
        %982 = vmatprep.subr.bf16.mxu0 0
        %983 = vmatpush1.bf16.msra.mxu0 0
        %984 = vmatprep.subr.bf16.mxu0 0
        %985 = vmatpush1.bf16.msra.mxu0 0
        %986 = vmatprep.subr.bf16.mxu0 0
        %987 = vmatpush1.bf16.msra.mxu0 0
        %988 = vmatprep.subr.bf16.mxu0 0
        %989 = vmatpush1.bf16.msra.mxu0 0
        %990 = vmatprep.subr.bf16.mxu0 0
        %991 = vmatpush1.bf16.msra.mxu0 0
        %992 = vmatprep.subr.bf16.mxu0 0
        %993 = vmatpush1.bf16.msra.mxu0 0
        %994 = vmatprep.subr.bf16.mxu0 0
        %995 = vmatpush1.bf16.msra.mxu0 0
        %996 = vmatprep.subr.bf16.mxu0 0
        %997 = vmatpush1.bf16.msra.mxu0 0
        %998 = vmatprep.subr.bf16.mxu0 0
        %999 = vmatpush1.bf16.msra.mxu0 0
        %1000 = vmatprep.subr.bf16.mxu0 0
        %1001 = vmatpush1.bf16.msra.mxu0 0
        %1002 = vmatprep.subr.bf16.mxu0 0
        %1003 = vmatpush1.bf16.msra.mxu0 0
        %1004 = vmatprep.subr.bf16.mxu0 0
        %1005 = vmatpush1.bf16.msra.mxu0 0
        %1006 = vmatprep.mubr.bf16.mxu0 0
        %1007 = vmatmul.mubr.bf16.gmra.mrb[0].mxu0 %v972
        %v1008 = vpop.f32.mrb[0].mxu0
        %v1009 = vadd.f32 0.0, %v1008
        %v1010 = vpop.f32.mrb[0].mxu0
        %v1011 = vpop.f32.mrb[0].mxu0
        %v1012 = vpop.f32.mrb[0].mxu0
        %1013 = vdwg.mxu0
        %v1014 = vadd.f32 %v876, %v1009
        %v1016 = vunpack.c.l.s4 1983009808
        %v1017 = vunpack.c.0.s8 %v1016
        %v1018 = vlaneseq
        %v1019 = vshrl.u32 %v1018, 7
        %v1020 = vsub.s32 %v1017, %v1019
        %v1021 = vrot.slane %v295, %v1020
        %v1022 = vcombine.high %v1021, %v1021
        %v1024 = vshrl.u32 %v1021, 16
        %v1026 = vrot.slane %v1024, 6
        %v1027 = vshll.u32 %v1021, 16
        %v1029 = vrot.slane %v1027, 7
        %v1030 = vor.u32 %v1026, %v1029
        %v1031 = vrot.slane %v1030, 2
        %v1033 = vshll.u32 %v1022, 16
        %v1035 = vrot.slane %v1033, 7
        %v1036 = vsel %vm346, %v1031, %v1035
        %s1037 = scalar_lea.vmem %s2, 16
        %v1038 = vld [vmem:[%s1037] sm:$0xf]
        %v1039 = vcombine.low %v374, %v388
        %v1040 = vcombine.low %v402, %v1036
        %v1042 = vunpack.c.l.s4 1983009808
        %v1043 = vunpack.c.0.s8 %v1042
        %v1044 = vlaneseq
        %v1045 = vshrl.u32 %v1044, 7
        %v1046 = vsub.s32 %v1043, %v1045
        %v1047 = vrot.slane %v1039, %v1046
        %v1049 = vunpack.c.l.s4 1983009808
        %v1050 = vunpack.c.0.s8 %v1049
        %v1051 = vlaneseq
        %v1052 = vshrl.u32 %v1051, 7
        %v1053 = vsub.s32 %v1050, %v1052
        %v1054 = vrot.slane %v1040, %v1053
        %v1055 = vcombine.low %v1047, %v1054
        %v1057 = vsel %vm422, %v1055, 0
        %v1060 = vsel %vm426, %v1038, 0
        %1062 = vmatprep.subr.bf16.mxu0 0
        %1063 = vmatpush1.bf16.msra.mxu0 %v1060
        %1064 = vmatprep.subr.bf16.mxu0 0
        %1065 = vmatpush1.bf16.msra.mxu0 0
        %1066 = vmatprep.subr.bf16.mxu0 0
        %1067 = vmatpush1.bf16.msra.mxu0 0
        %1068 = vmatprep.subr.bf16.mxu0 0
        %1069 = vmatpush1.bf16.msra.mxu0 0
        %1070 = vmatprep.subr.bf16.mxu0 0
        %1071 = vmatpush1.bf16.msra.mxu0 0
        %1072 = vmatprep.subr.bf16.mxu0 0
        %1073 = vmatpush1.bf16.msra.mxu0 0
        %1074 = vmatprep.subr.bf16.mxu0 0
        %1075 = vmatpush1.bf16.msra.mxu0 0
        %1076 = vmatprep.subr.bf16.mxu0 0
        %1077 = vmatpush1.bf16.msra.mxu0 0
        %1078 = vmatprep.subr.bf16.mxu0 0
        %1079 = vmatpush1.bf16.msra.mxu0 0
        %1080 = vmatprep.subr.bf16.mxu0 0
        %1081 = vmatpush1.bf16.msra.mxu0 0
        %1082 = vmatprep.subr.bf16.mxu0 0
        %1083 = vmatpush1.bf16.msra.mxu0 0
        %1084 = vmatprep.subr.bf16.mxu0 0
        %1085 = vmatpush1.bf16.msra.mxu0 0
        %1086 = vmatprep.subr.bf16.mxu0 0
        %1087 = vmatpush1.bf16.msra.mxu0 0
        %1088 = vmatprep.subr.bf16.mxu0 0
        %1089 = vmatpush1.bf16.msra.mxu0 0
        %1090 = vmatprep.subr.bf16.mxu0 0
        %1091 = vmatpush1.bf16.msra.mxu0 0
        %1092 = vmatprep.subr.bf16.mxu0 0
        %1093 = vmatpush1.bf16.msra.mxu0 0
        %1094 = vmatprep.mubr.bf16.mxu0 0
        %1095 = vmatmul.mubr.bf16.gmra.mrb[0].mxu0 %v1057
        %v1096 = vpop.f32.mrb[0].mxu0
        %v1097 = vadd.f32 0.0, %v1096
        %v1098 = vpop.f32.mrb[0].mxu0
        %v1099 = vpop.f32.mrb[0].mxu0
        %v1100 = vadd.f32 0.0, %v1099
        %v1101 = vpop.f32.mrb[0].mxu0
        %1102 = vdwg.mxu0
        %v1103 = vadd.f32 %v944, %v1097
        %v1104 = vadd.f32 %v945, %v1100
        %v1106 = vunpack.c.l.s4 1966171168
        %v1107 = vunpack.c.0.s8 %v1106
        %v1108 = vlaneseq
        %v1109 = vshrl.u32 %v1108, 7
        %v1110 = vsub.s32 %v1107, %v1109
        %v1111 = vrot.slane %v299, %v1110
        %v1112 = vcombine.high %v1111, %v1111
        %v1114 = vshrl.u32 %v1111, 16
        %v1116 = vrot.slane %v1114, 7
        %v1117 = vrot.slane %v1116, 1
        %v1119 = vshll.u32 %v1112, 16
        %v1121 = vsel %vm567, %v1117, %v1119
        %s1122 = scalar_lea.vmem %s3, 32
        %v1123 = vld [vmem:[%s1122] sm:$0xf]
        %v1124 = vld [vmem:[%s1122 + $0x4] sm:$0xf]
        %v1125 = vcombine.low %v585, %v1121
        %v1127 = vunpack.c.l.s4 1966171168
        %v1128 = vunpack.c.0.s8 %v1127
        %v1129 = vlaneseq
        %v1130 = vshrl.u32 %v1129, 7
        %v1131 = vsub.s32 %v1128, %v1130
        %v1132 = vrot.slane %v1125, %v1131
        %v1134 = vunpack.c.l.s4 1966171168
        %v1135 = vunpack.c.0.s8 %v1134
        %v1136 = vlaneseq
        %v1137 = vshrl.u32 %v1136, 7
        %v1138 = vsub.s32 %v1135, %v1137
        %v1139 = vrot.slane %v1132, %v1138
        %v1142 = vunpack.c.l.b16 %v1123
        %v1143 = vunpack.c.l.b16 %v1124
        %v1144 = vpack.c.b16 %v1143, %v1142
        %v1147 = vsel %vm610, %v1139, 0
        %1149 = vmatprep.subr.bf16.mxu0 0
        %1150 = vmatpush1.bf16.msra.mxu0 %v1144
        %1151 = vmatprep.subr.bf16.mxu0 0
        %1152 = vmatpush1.bf16.msra.mxu0 0
        %1153 = vmatprep.subr.bf16.mxu0 0
        %1154 = vmatpush1.bf16.msra.mxu0 0
        %1155 = vmatprep.subr.bf16.mxu0 0
        %1156 = vmatpush1.bf16.msra.mxu0 0
        %1157 = vmatprep.subr.bf16.mxu0 0
        %1158 = vmatpush1.bf16.msra.mxu0 0
        %1159 = vmatprep.subr.bf16.mxu0 0
        %1160 = vmatpush1.bf16.msra.mxu0 0
        %1161 = vmatprep.subr.bf16.mxu0 0
        %1162 = vmatpush1.bf16.msra.mxu0 0
        %1163 = vmatprep.subr.bf16.mxu0 0
        %1164 = vmatpush1.bf16.msra.mxu0 0
        %1165 = vmatprep.subr.bf16.mxu0 0
        %1166 = vmatpush1.bf16.msra.mxu0 0
        %1167 = vmatprep.subr.bf16.mxu0 0
        %1168 = vmatpush1.bf16.msra.mxu0 0
        %1169 = vmatprep.subr.bf16.mxu0 0
        %1170 = vmatpush1.bf16.msra.mxu0 0
        %1171 = vmatprep.subr.bf16.mxu0 0
        %1172 = vmatpush1.bf16.msra.mxu0 0
        %1173 = vmatprep.subr.bf16.mxu0 0
        %1174 = vmatpush1.bf16.msra.mxu0 0
        %1175 = vmatprep.subr.bf16.mxu0 0
        %1176 = vmatpush1.bf16.msra.mxu0 0
        %1177 = vmatprep.subr.bf16.mxu0 0
        %1178 = vmatpush1.bf16.msra.mxu0 0
        %1179 = vmatprep.subr.bf16.mxu0 0
        %1180 = vmatpush1.bf16.msra.mxu0 0
        %1181 = vmatprep.mubr.bf16.mxu0 0
        %1182 = vmatmul.mubr.bf16.gmra.mrb[0].mxu0 %v1147
        %v1183 = vpop.f32.mrb[0].mxu0
        %v1184 = vadd.f32 0.0, %v1183
        %v1185 = vpop.f32.mrb[0].mxu0
        %v1186 = vpop.f32.mrb[0].mxu0
        %v1187 = vpop.f32.mrb[0].mxu0
        %1188 = vdwg.mxu0
        %v1189 = vadd.f32 %v1014, %v1184
        %v1190 = vrot.slane %v1021, 7
        %v1191 = vrot.slane %v1190, 2
        %v1192 = vrot.slane %v1022, 7
        %v1193 = vsel %vm724, %v1191, %v1192
        %s1194 = scalar_lea.vmem %s2, 20
        %v1195 = vld [vmem:[%s1194] sm:$0xf]
        %v1196 = vcombine.low %v732, %v736
        %v1197 = vcombine.low %v740, %v1193
        %v1199 = vunpack.c.l.s4 1983009808
        %v1200 = vunpack.c.0.s8 %v1199
        %v1201 = vlaneseq
        %v1202 = vshrl.u32 %v1201, 7
        %v1203 = vsub.s32 %v1200, %v1202
        %v1204 = vrot.slane %v1196, %v1203
        %v1206 = vunpack.c.l.s4 1983009808
        %v1207 = vunpack.c.0.s8 %v1206
        %v1208 = vlaneseq
        %v1209 = vshrl.u32 %v1208, 7
        %v1210 = vsub.s32 %v1207, %v1209
        %v1211 = vrot.slane %v1197, %v1210
        %v1212 = vcombine.low %v1204, %v1211
        %v1214 = vsel %vm422, %v1212, 0
        %v1217 = vsel %vm426, %v1195, 0
        %1219 = vmatprep.subr.bf16.mxu0 0
        %1220 = vmatpush1.bf16.msra.mxu0 %v1217
        %1221 = vmatprep.subr.bf16.mxu0 0
        %1222 = vmatpush1.bf16.msra.mxu0 0
        %1223 = vmatprep.subr.bf16.mxu0 0
        %1224 = vmatpush1.bf16.msra.mxu0 0
        %1225 = vmatprep.subr.bf16.mxu0 0
        %1226 = vmatpush1.bf16.msra.mxu0 0
        %1227 = vmatprep.subr.bf16.mxu0 0
        %1228 = vmatpush1.bf16.msra.mxu0 0
        %1229 = vmatprep.subr.bf16.mxu0 0
        %1230 = vmatpush1.bf16.msra.mxu0 0
        %1231 = vmatprep.subr.bf16.mxu0 0
        %1232 = vmatpush1.bf16.msra.mxu0 0
        %1233 = vmatprep.subr.bf16.mxu0 0
        %1234 = vmatpush1.bf16.msra.mxu0 0
        %1235 = vmatprep.subr.bf16.mxu0 0
        %1236 = vmatpush1.bf16.msra.mxu0 0
        %1237 = vmatprep.subr.bf16.mxu0 0
        %1238 = vmatpush1.bf16.msra.mxu0 0
        %1239 = vmatprep.subr.bf16.mxu0 0
        %1240 = vmatpush1.bf16.msra.mxu0 0
        %1241 = vmatprep.subr.bf16.mxu0 0
        %1242 = vmatpush1.bf16.msra.mxu0 0
        %1243 = vmatprep.subr.bf16.mxu0 0
        %1244 = vmatpush1.bf16.msra.mxu0 0
        %1245 = vmatprep.subr.bf16.mxu0 0
        %1246 = vmatpush1.bf16.msra.mxu0 0
        %1247 = vmatprep.subr.bf16.mxu0 0
        %1248 = vmatpush1.bf16.msra.mxu0 0
        %1249 = vmatprep.subr.bf16.mxu0 0
        %1250 = vmatpush1.bf16.msra.mxu0 0
        %1251 = vmatprep.mubr.bf16.mxu0 0
        %1252 = vmatmul.mubr.bf16.gmra.mrb[0].mxu0 %v1214
        %v1253 = vpop.f32.mrb[0].mxu0
        %v1254 = vadd.f32 0.0, %v1253
        %v1255 = vpop.f32.mrb[0].mxu0
        %v1256 = vpop.f32.mrb[0].mxu0
        %v1257 = vadd.f32 0.0, %v1256
        %v1258 = vpop.f32.mrb[0].mxu0
        %1259 = vdwg.mxu0
        %v1260 = vadd.f32 %v1103, %v1254
        %v1261 = vadd.f32 %v1104, %v1257
        %s1262 = scalar_lea.vmem %s3, 40
        %v1263 = vld [vmem:[%s1262] sm:$0xf]
        %v1264 = vld [vmem:[%s1262 + $0x4] sm:$0xf]
        %v1265 = vcombine.low %v552, %v1112
        %v1267 = vunpack.c.l.s4 1966171168
        %v1268 = vunpack.c.0.s8 %v1267
        %v1269 = vlaneseq
        %v1270 = vshrl.u32 %v1269, 7
        %v1271 = vsub.s32 %v1268, %v1270
        %v1272 = vrot.slane %v1265, %v1271
        %v1274 = vunpack.c.l.s4 1966171168
        %v1275 = vunpack.c.0.s8 %v1274
        %v1276 = vlaneseq
        %v1277 = vshrl.u32 %v1276, 7
        %v1278 = vsub.s32 %v1275, %v1277
        %v1279 = vrot.slane %v1272, %v1278
        %v1282 = vunpack.c.l.b16 %v1263
        %v1283 = vunpack.c.l.b16 %v1264
        %v1284 = vpack.c.b16 %v1283, %v1282
        %v1287 = vsel %vm610, %v1279, 0
        %1289 = vmatprep.subr.bf16.mxu0 0
        %1290 = vmatpush1.bf16.msra.mxu0 %v1284
        %1291 = vmatprep.subr.bf16.mxu0 0
        %1292 = vmatpush1.bf16.msra.mxu0 0
        %1293 = vmatprep.subr.bf16.mxu0 0
        %1294 = vmatpush1.bf16.msra.mxu0 0
        %1295 = vmatprep.subr.bf16.mxu0 0
        %1296 = vmatpush1.bf16.msra.mxu0 0
        %1297 = vmatprep.subr.bf16.mxu0 0
        %1298 = vmatpush1.bf16.msra.mxu0 0
        %1299 = vmatprep.subr.bf16.mxu0 0
        %1300 = vmatpush1.bf16.msra.mxu0 0
        %1301 = vmatprep.subr.bf16.mxu0 0
        %1302 = vmatpush1.bf16.msra.mxu0 0
        %1303 = vmatprep.subr.bf16.mxu0 0
        %1304 = vmatpush1.bf16.msra.mxu0 0
        %1305 = vmatprep.subr.bf16.mxu0 0
        %1306 = vmatpush1.bf16.msra.mxu0 0
        %1307 = vmatprep.subr.bf16.mxu0 0
        %1308 = vmatpush1.bf16.msra.mxu0 0
        %1309 = vmatprep.subr.bf16.mxu0 0
        %1310 = vmatpush1.bf16.msra.mxu0 0
        %1311 = vmatprep.subr.bf16.mxu0 0
        %1312 = vmatpush1.bf16.msra.mxu0 0
        %1313 = vmatprep.subr.bf16.mxu0 0
        %1314 = vmatpush1.bf16.msra.mxu0 0
        %1315 = vmatprep.subr.bf16.mxu0 0
        %1316 = vmatpush1.bf16.msra.mxu0 0
        %1317 = vmatprep.subr.bf16.mxu0 0
        %1318 = vmatpush1.bf16.msra.mxu0 0
        %1319 = vmatprep.subr.bf16.mxu0 0
        %1320 = vmatpush1.bf16.msra.mxu0 0
        %1321 = vmatprep.mubr.bf16.mxu0 0
        %1322 = vmatmul.mubr.bf16.gmra.mrb[0].mxu0 %v1287
        %v1323 = vpop.f32.mrb[0].mxu0
        %v1324 = vadd.f32 0.0, %v1323
        %v1325 = vpop.f32.mrb[0].mxu0
        %v1326 = vpop.f32.mrb[0].mxu0
        %v1327 = vpop.f32.mrb[0].mxu0
        %1328 = vdwg.mxu0
        %v1329 = vadd.f32 %v1189, %v1324
        %s1330 = scalar_lea.vmem %s2, 24
        %v1331 = vld [vmem:[%s1330] sm:$0xf]
        %v1333 = vcombine.low %v295, %v296
        %v1335 = vunpack.c.l.s4 1983009808
        %v1336 = vunpack.c.0.s8 %v1335
        %v1337 = vlaneseq
        %v1338 = vshrl.u32 %v1337, 7
        %v1339 = vsub.s32 %v1336, %v1338
        %v1340 = vrot.slane %v1333, %v1339
        %v1341 = vcombine.low %v486, %v1340
        %v1343 = vsel %vm422, %v1341, 0
        %v1346 = vsel %vm426, %v1331, 0
        %1348 = vmatprep.subr.bf16.mxu0 0
        %1349 = vmatpush1.bf16.msra.mxu0 %v1346
        %1350 = vmatprep.subr.bf16.mxu0 0
        %1351 = vmatpush1.bf16.msra.mxu0 0
        %1352 = vmatprep.subr.bf16.mxu0 0
        %1353 = vmatpush1.bf16.msra.mxu0 0
        %1354 = vmatprep.subr.bf16.mxu0 0
        %1355 = vmatpush1.bf16.msra.mxu0 0
        %1356 = vmatprep.subr.bf16.mxu0 0
        %1357 = vmatpush1.bf16.msra.mxu0 0
        %1358 = vmatprep.subr.bf16.mxu0 0
        %1359 = vmatpush1.bf16.msra.mxu0 0
        %1360 = vmatprep.subr.bf16.mxu0 0
        %1361 = vmatpush1.bf16.msra.mxu0 0
        %1362 = vmatprep.subr.bf16.mxu0 0
        %1363 = vmatpush1.bf16.msra.mxu0 0
        %1364 = vmatprep.subr.bf16.mxu0 0
        %1365 = vmatpush1.bf16.msra.mxu0 0
        %1366 = vmatprep.subr.bf16.mxu0 0
        %1367 = vmatpush1.bf16.msra.mxu0 0
        %1368 = vmatprep.subr.bf16.mxu0 0
        %1369 = vmatpush1.bf16.msra.mxu0 0
        %1370 = vmatprep.subr.bf16.mxu0 0
        %1371 = vmatpush1.bf16.msra.mxu0 0
        %1372 = vmatprep.subr.bf16.mxu0 0
        %1373 = vmatpush1.bf16.msra.mxu0 0
        %1374 = vmatprep.subr.bf16.mxu0 0
        %1375 = vmatpush1.bf16.msra.mxu0 0
        %1376 = vmatprep.subr.bf16.mxu0 0
        %1377 = vmatpush1.bf16.msra.mxu0 0
        %1378 = vmatprep.subr.bf16.mxu0 0
        %1379 = vmatpush1.bf16.msra.mxu0 0
        %1380 = vmatprep.mubr.bf16.mxu0 0
        %1381 = vmatmul.mubr.bf16.gmra.mrb[0].mxu0 %v1343
        %v1382 = vpop.f32.mrb[0].mxu0
        %v1383 = vadd.f32 0.0, %v1382
        %v1384 = vpop.f32.mrb[0].mxu0
        %v1385 = vpop.f32.mrb[0].mxu0
        %v1386 = vadd.f32 0.0, %v1385
        %v1387 = vpop.f32.mrb[0].mxu0
        %1388 = vdwg.mxu0
        %v1389 = vadd.f32 %v1260, %v1383
        %v1390 = vadd.f32 %v1261, %v1386
        %s1391 = scalar_lea.vmem %s3, 48
        %v1392 = vld [vmem:[%s1391] sm:$0xf]
        %v1393 = vld [vmem:[%s1391 + $0x4] sm:$0xf]
        %v1395 = vcombine.low %v299, %v300
        %v1397 = vunpack.c.l.s4 1966171168
        %v1398 = vunpack.c.0.s8 %v1397
        %v1399 = vlaneseq
        %v1400 = vshrl.u32 %v1399, 7
        %v1401 = vsub.s32 %v1398, %v1400
        %v1402 = vrot.slane %v1395, %v1401
        %v1404 = vunpack.c.l.s4 1966171168
        %v1405 = vunpack.c.0.s8 %v1404
        %v1406 = vlaneseq
        %v1407 = vshrl.u32 %v1406, 7
        %v1408 = vsub.s32 %v1405, %v1407
        %v1409 = vrot.slane %v1402, %v1408
        %v1412 = vunpack.c.l.b16 %v1392
        %v1413 = vunpack.c.l.b16 %v1393
        %v1414 = vpack.c.b16 %v1413, %v1412
        %v1417 = vsel %vm610, %v1409, 0
        %1419 = vmatprep.subr.bf16.mxu0 0
        %1420 = vmatpush1.bf16.msra.mxu0 %v1414
        %1421 = vmatprep.subr.bf16.mxu0 0
        %1422 = vmatpush1.bf16.msra.mxu0 0
        %1423 = vmatprep.subr.bf16.mxu0 0
        %1424 = vmatpush1.bf16.msra.mxu0 0
        %1425 = vmatprep.subr.bf16.mxu0 0
        %1426 = vmatpush1.bf16.msra.mxu0 0
        %1427 = vmatprep.subr.bf16.mxu0 0
        %1428 = vmatpush1.bf16.msra.mxu0 0
        %1429 = vmatprep.subr.bf16.mxu0 0
        %1430 = vmatpush1.bf16.msra.mxu0 0
        %1431 = vmatprep.subr.bf16.mxu0 0
        %1432 = vmatpush1.bf16.msra.mxu0 0
        %1433 = vmatprep.subr.bf16.mxu0 0
        %1434 = vmatpush1.bf16.msra.mxu0 0
        %1435 = vmatprep.subr.bf16.mxu0 0
        %1436 = vmatpush1.bf16.msra.mxu0 0
        %1437 = vmatprep.subr.bf16.mxu0 0
        %1438 = vmatpush1.bf16.msra.mxu0 0
        %1439 = vmatprep.subr.bf16.mxu0 0
        %1440 = vmatpush1.bf16.msra.mxu0 0
        %1441 = vmatprep.subr.bf16.mxu0 0
        %1442 = vmatpush1.bf16.msra.mxu0 0
        %1443 = vmatprep.subr.bf16.mxu0 0
        %1444 = vmatpush1.bf16.msra.mxu0 0
        %1445 = vmatprep.subr.bf16.mxu0 0
        %1446 = vmatpush1.bf16.msra.mxu0 0
        %1447 = vmatprep.subr.bf16.mxu0 0
        %1448 = vmatpush1.bf16.msra.mxu0 0
        %1449 = vmatprep.subr.bf16.mxu0 0
        %1450 = vmatpush1.bf16.msra.mxu0 0
        %1451 = vmatprep.mubr.bf16.mxu0 0
        %1452 = vmatmul.mubr.bf16.gmra.mrb[0].mxu0 %v1417
        %v1453 = vpop.f32.mrb[0].mxu0
        %v1454 = vadd.f32 0.0, %v1453
        %v1455 = vpop.f32.mrb[0].mxu0
        %v1456 = vpop.f32.mrb[0].mxu0
        %v1457 = vpop.f32.mrb[0].mxu0
        %1458 = vdwg.mxu0
        %v1459 = vadd.f32 %v1329, %v1454
        %v1461 = vunpack.c.l.s4 1983009808
        %v1462 = vunpack.c.0.s8 %v1461
        %v1463 = vlaneseq
        %v1464 = vshrl.u32 %v1463, 7
        %v1465 = vsub.s32 %v1462, %v1464
        %v1466 = vrot.slane %v296, %v1465
        %v1467 = vcombine.high %v1466, %v1466
        %v1469 = vshrl.u32 %v1466, 16
        %v1471 = vrot.slane %v1469, 6
        %v1472 = vshll.u32 %v1466, 16
        %v1474 = vrot.slane %v1472, 7
        %v1475 = vor.u32 %v1471, %v1474
        %v1476 = vrot.slane %v1475, 2
        %v1478 = vshll.u32 %v1467, 16
        %v1480 = vrot.slane %v1478, 7
        %v1481 = vsel %vm346, %v1476, %v1480
        %s1482 = scalar_lea.vmem %s2, 28
        %v1483 = vld [vmem:[%s1482] sm:$0xf]
        %v1484 = vcombine.low %v1036, %v1481
        %v1486 = vunpack.c.l.s4 1983009808
        %v1487 = vunpack.c.0.s8 %v1486
        %v1488 = vlaneseq
        %v1489 = vshrl.u32 %v1488, 7
        %v1490 = vsub.s32 %v1487, %v1489
        %v1491 = vrot.slane %v1484, %v1490
        %v1492 = vcombine.low %v420, %v1491
        %v1494 = vsel %vm422, %v1492, 0
        %v1497 = vsel %vm426, %v1483, 0
        %1499 = vmatprep.subr.bf16.mxu0 0
        %1500 = vmatpush1.bf16.msra.mxu0 %v1497
        %1501 = vmatprep.subr.bf16.mxu0 0
        %1502 = vmatpush1.bf16.msra.mxu0 0
        %1503 = vmatprep.subr.bf16.mxu0 0
        %1504 = vmatpush1.bf16.msra.mxu0 0
        %1505 = vmatprep.subr.bf16.mxu0 0
        %1506 = vmatpush1.bf16.msra.mxu0 0
        %1507 = vmatprep.subr.bf16.mxu0 0
        %1508 = vmatpush1.bf16.msra.mxu0 0
        %1509 = vmatprep.subr.bf16.mxu0 0
        %1510 = vmatpush1.bf16.msra.mxu0 0
        %1511 = vmatprep.subr.bf16.mxu0 0
        %1512 = vmatpush1.bf16.msra.mxu0 0
        %1513 = vmatprep.subr.bf16.mxu0 0
        %1514 = vmatpush1.bf16.msra.mxu0 0
        %1515 = vmatprep.subr.bf16.mxu0 0
        %1516 = vmatpush1.bf16.msra.mxu0 0
        %1517 = vmatprep.subr.bf16.mxu0 0
        %1518 = vmatpush1.bf16.msra.mxu0 0
        %1519 = vmatprep.subr.bf16.mxu0 0
        %1520 = vmatpush1.bf16.msra.mxu0 0
        %1521 = vmatprep.subr.bf16.mxu0 0
        %1522 = vmatpush1.bf16.msra.mxu0 0
        %1523 = vmatprep.subr.bf16.mxu0 0
        %1524 = vmatpush1.bf16.msra.mxu0 0
        %1525 = vmatprep.subr.bf16.mxu0 0
        %1526 = vmatpush1.bf16.msra.mxu0 0
        %1527 = vmatprep.subr.bf16.mxu0 0
        %1528 = vmatpush1.bf16.msra.mxu0 0
        %1529 = vmatprep.subr.bf16.mxu0 0
        %1530 = vmatpush1.bf16.msra.mxu0 0
        %1531 = vmatprep.mubr.bf16.mxu0 0
        %1532 = vmatmul.mubr.bf16.gmra.mrb[0].mxu0 %v1494
        %v1533 = vpop.f32.mrb[0].mxu0
        %v1534 = vadd.f32 0.0, %v1533
        %v1535 = vpop.f32.mrb[0].mxu0
        %v1536 = vpop.f32.mrb[0].mxu0
        %v1537 = vadd.f32 0.0, %v1536
        %v1538 = vpop.f32.mrb[0].mxu0
        %1539 = vdwg.mxu0
        %v1540 = vadd.f32 %v1389, %v1534
        %v1541 = vadd.f32 %v1390, %v1537
        %v1543 = vunpack.c.l.s4 1966171168
        %v1544 = vunpack.c.0.s8 %v1543
        %v1545 = vlaneseq
        %v1546 = vshrl.u32 %v1545, 7
        %v1547 = vsub.s32 %v1544, %v1546
        %v1548 = vrot.slane %v300, %v1547
        %v1549 = vcombine.high %v1548, %v1548
        %v1551 = vshrl.u32 %v1548, 16
        %v1553 = vrot.slane %v1551, 7
        %v1554 = vrot.slane %v1553, 1
        %v1556 = vshll.u32 %v1549, 16
        %v1558 = vsel %vm567, %v1554, %v1556
        %s1559 = scalar_lea.vmem %s3, 56
        %v1560 = vld [vmem:[%s1559] sm:$0xf]
        %v1561 = vld [vmem:[%s1559 + $0x4] sm:$0xf]
        %v1562 = vcombine.low %v1121, %v1558
        %v1564 = vunpack.c.l.s4 1966171168
        %v1565 = vunpack.c.0.s8 %v1564
        %v1566 = vlaneseq
        %v1567 = vshrl.u32 %v1566, 7
        %v1568 = vsub.s32 %v1565, %v1567
        %v1569 = vrot.slane %v1562, %v1568
        %v1571 = vunpack.c.l.s4 1966171168
        %v1572 = vunpack.c.0.s8 %v1571
        %v1573 = vlaneseq
        %v1574 = vshrl.u32 %v1573, 7
        %v1575 = vsub.s32 %v1572, %v1574
        %v1576 = vrot.slane %v1569, %v1575
        %v1579 = vunpack.c.l.b16 %v1560
        %v1580 = vunpack.c.l.b16 %v1561
        %v1581 = vpack.c.b16 %v1580, %v1579
        %v1584 = vsel %vm610, %v1576, 0
        %1586 = vmatprep.subr.bf16.mxu0 0
        %1587 = vmatpush1.bf16.msra.mxu0 %v1581
        %1588 = vmatprep.subr.bf16.mxu0 0
        %1589 = vmatpush1.bf16.msra.mxu0 0
        %1590 = vmatprep.subr.bf16.mxu0 0
        %1591 = vmatpush1.bf16.msra.mxu0 0
        %1592 = vmatprep.subr.bf16.mxu0 0
        %1593 = vmatpush1.bf16.msra.mxu0 0
        %1594 = vmatprep.subr.bf16.mxu0 0
        %1595 = vmatpush1.bf16.msra.mxu0 0
        %1596 = vmatprep.subr.bf16.mxu0 0
        %1597 = vmatpush1.bf16.msra.mxu0 0
        %1598 = vmatprep.subr.bf16.mxu0 0
        %1599 = vmatpush1.bf16.msra.mxu0 0
        %1600 = vmatprep.subr.bf16.mxu0 0
        %1601 = vmatpush1.bf16.msra.mxu0 0
        %1602 = vmatprep.subr.bf16.mxu0 0
        %1603 = vmatpush1.bf16.msra.mxu0 0
        %1604 = vmatprep.subr.bf16.mxu0 0
        %1605 = vmatpush1.bf16.msra.mxu0 0
        %1606 = vmatprep.subr.bf16.mxu0 0
        %1607 = vmatpush1.bf16.msra.mxu0 0
        %1608 = vmatprep.subr.bf16.mxu0 0
        %1609 = vmatpush1.bf16.msra.mxu0 0
        %1610 = vmatprep.subr.bf16.mxu0 0
        %1611 = vmatpush1.bf16.msra.mxu0 0
        %1612 = vmatprep.subr.bf16.mxu0 0
        %1613 = vmatpush1.bf16.msra.mxu0 0
        %1614 = vmatprep.subr.bf16.mxu0 0
        %1615 = vmatpush1.bf16.msra.mxu0 0
        %1616 = vmatprep.subr.bf16.mxu0 0
        %1617 = vmatpush1.bf16.msra.mxu0 0
        %1618 = vmatprep.mubr.bf16.mxu0 0
        %1619 = vmatmul.mubr.bf16.gmra.mrb[0].mxu0 %v1584
        %v1620 = vpop.f32.mrb[0].mxu0
        %v1621 = vadd.f32 0.0, %v1620
        %v1622 = vpop.f32.mrb[0].mxu0
        %v1623 = vpop.f32.mrb[0].mxu0
        %v1624 = vpop.f32.mrb[0].mxu0
        %1625 = vdwg.mxu0
        %v1626 = vadd.f32 %v1459, %v1621
        %v1627 = vrot.slane %v1466, 7
        %v1628 = vrot.slane %v1627, 2
        %v1629 = vrot.slane %v1467, 7
        %v1630 = vsel %vm724, %v1628, %v1629
        %s1631 = scalar_lea.vmem %s2, 32
        %v1632 = vld [vmem:[%s1631] sm:$0xf]
        %v1633 = vcombine.low %v1193, %v1630
        %v1635 = vunpack.c.l.s4 1983009808
        %v1636 = vunpack.c.0.s8 %v1635
        %v1637 = vlaneseq
        %v1638 = vshrl.u32 %v1637, 7
        %v1639 = vsub.s32 %v1636, %v1638
        %v1640 = vrot.slane %v1633, %v1639
        %v1641 = vcombine.low %v758, %v1640
        %v1643 = vsel %vm422, %v1641, 0
        %v1646 = vsel %vm426, %v1632, 0
        %1648 = vmatprep.subr.bf16.mxu0 0
        %1649 = vmatpush1.bf16.msra.mxu0 %v1646
        %1650 = vmatprep.subr.bf16.mxu0 0
        %1651 = vmatpush1.bf16.msra.mxu0 0
        %1652 = vmatprep.subr.bf16.mxu0 0
        %1653 = vmatpush1.bf16.msra.mxu0 0
        %1654 = vmatprep.subr.bf16.mxu0 0
        %1655 = vmatpush1.bf16.msra.mxu0 0
        %1656 = vmatprep.subr.bf16.mxu0 0
        %1657 = vmatpush1.bf16.msra.mxu0 0
        %1658 = vmatprep.subr.bf16.mxu0 0
        %1659 = vmatpush1.bf16.msra.mxu0 0
        %1660 = vmatprep.subr.bf16.mxu0 0
        %1661 = vmatpush1.bf16.msra.mxu0 0
        %1662 = vmatprep.subr.bf16.mxu0 0
        %1663 = vmatpush1.bf16.msra.mxu0 0
        %1664 = vmatprep.subr.bf16.mxu0 0
        %1665 = vmatpush1.bf16.msra.mxu0 0
        %1666 = vmatprep.subr.bf16.mxu0 0
        %1667 = vmatpush1.bf16.msra.mxu0 0
        %1668 = vmatprep.subr.bf16.mxu0 0
        %1669 = vmatpush1.bf16.msra.mxu0 0
        %1670 = vmatprep.subr.bf16.mxu0 0
        %1671 = vmatpush1.bf16.msra.mxu0 0
        %1672 = vmatprep.subr.bf16.mxu0 0
        %1673 = vmatpush1.bf16.msra.mxu0 0
        %1674 = vmatprep.subr.bf16.mxu0 0
        %1675 = vmatpush1.bf16.msra.mxu0 0
        %1676 = vmatprep.subr.bf16.mxu0 0
        %1677 = vmatpush1.bf16.msra.mxu0 0
        %1678 = vmatprep.subr.bf16.mxu0 0
        %1679 = vmatpush1.bf16.msra.mxu0 0
        %1680 = vmatprep.mubr.bf16.mxu0 0
        %1681 = vmatmul.mubr.bf16.gmra.mrb[0].mxu0 %v1643
        %v1682 = vpop.f32.mrb[0].mxu0
        %v1683 = vadd.f32 0.0, %v1682
        %v1684 = vpop.f32.mrb[0].mxu0
        %v1685 = vpop.f32.mrb[0].mxu0
        %v1686 = vadd.f32 0.0, %v1685
        %v1687 = vpop.f32.mrb[0].mxu0
        %1688 = vdwg.mxu0
        %v1689 = vadd.f32 %v1540, %v1683
        %v1690 = vadd.f32 %v1541, %v1686
        %s1691 = scalar_lea.vmem %s3, 64
        %v1692 = vld [vmem:[%s1691] sm:$0xf]
        %v1693 = vld [vmem:[%s1691 + $0x4] sm:$0xf]
        %v1694 = vcombine.low %v1112, %v1549
        %v1696 = vunpack.c.l.s4 1966171168
        %v1697 = vunpack.c.0.s8 %v1696
        %v1698 = vlaneseq
        %v1699 = vshrl.u32 %v1698, 7
        %v1700 = vsub.s32 %v1697, %v1699
        %v1701 = vrot.slane %v1694, %v1700
        %v1703 = vunpack.c.l.s4 1966171168
        %v1704 = vunpack.c.0.s8 %v1703
        %v1705 = vlaneseq
        %v1706 = vshrl.u32 %v1705, 7
        %v1707 = vsub.s32 %v1704, %v1706
        %v1708 = vrot.slane %v1701, %v1707
        %v1711 = vunpack.c.l.b16 %v1692
        %v1712 = vunpack.c.l.b16 %v1693
        %v1713 = vpack.c.b16 %v1712, %v1711
        %v1716 = vsel %vm610, %v1708, 0
        %1718 = vmatprep.subr.bf16.mxu0 0
        %1719 = vmatpush1.bf16.msra.mxu0 %v1713
        %1720 = vmatprep.subr.bf16.mxu0 0
        %1721 = vmatpush1.bf16.msra.mxu0 0
        %1722 = vmatprep.subr.bf16.mxu0 0
        %1723 = vmatpush1.bf16.msra.mxu0 0
        %1724 = vmatprep.subr.bf16.mxu0 0
        %1725 = vmatpush1.bf16.msra.mxu0 0
        %1726 = vmatprep.subr.bf16.mxu0 0
        %1727 = vmatpush1.bf16.msra.mxu0 0
        %1728 = vmatprep.subr.bf16.mxu0 0
        %1729 = vmatpush1.bf16.msra.mxu0 0
        %1730 = vmatprep.subr.bf16.mxu0 0
        %1731 = vmatpush1.bf16.msra.mxu0 0
        %1732 = vmatprep.subr.bf16.mxu0 0
        %1733 = vmatpush1.bf16.msra.mxu0 0
        %1734 = vmatprep.subr.bf16.mxu0 0
        %1735 = vmatpush1.bf16.msra.mxu0 0
        %1736 = vmatprep.subr.bf16.mxu0 0
        %1737 = vmatpush1.bf16.msra.mxu0 0
        %1738 = vmatprep.subr.bf16.mxu0 0
        %1739 = vmatpush1.bf16.msra.mxu0 0
        %1740 = vmatprep.subr.bf16.mxu0 0
        %1741 = vmatpush1.bf16.msra.mxu0 0
        %1742 = vmatprep.subr.bf16.mxu0 0
        %1743 = vmatpush1.bf16.msra.mxu0 0
        %1744 = vmatprep.subr.bf16.mxu0 0
        %1745 = vmatpush1.bf16.msra.mxu0 0
        %1746 = vmatprep.subr.bf16.mxu0 0
        %1747 = vmatpush1.bf16.msra.mxu0 0
        %1748 = vmatprep.subr.bf16.mxu0 0
        %1749 = vmatpush1.bf16.msra.mxu0 0
        %1750 = vmatprep.mubr.bf16.mxu0 0
        %1751 = vmatmul.mubr.bf16.gmra.mrb[0].mxu0 %v1716
        %v1752 = vpop.f32.mrb[0].mxu0
        %v1753 = vadd.f32 0.0, %v1752
        %v1754 = vpop.f32.mrb[0].mxu0
        %v1755 = vpop.f32.mrb[0].mxu0
        %v1756 = vpop.f32.mrb[0].mxu0
        %1757 = vdwg.mxu0
        %v1758 = vadd.f32 %v1626, %v1753
        %v1759 = vld [vmem:[%s4] sm:$0xff]
        %v1760 = vld [vmem:[%s4 + $0x8] sm:$0xff]
        %vm1761 = vcmask 31744
        %v1763 = vsel %vm1761, %v1759, 0
        %v1766 = vsel %vm1761, %v1760, 0
        %v1769 = vsel %vm426, %v1758, 0
        %1771 = vmatprep.subr.mxu0 0.0
        %1772 = vmatpush1.msra.mxu0 %v1769
        %1773 = vmatprep.subr.mxu0 0.0
        %1774 = vmatpush1.msra.mxu0 0.0
        %1775 = vmatprep.subr.mxu0 0.0
        %1776 = vmatpush1.msra.mxu0 0.0
        %1777 = vmatprep.subr.mxu0 0.0
        %1778 = vmatpush1.msra.mxu0 0.0
        %1779 = vmatprep.subr.mxu0 0.0
        %1780 = vmatpush1.msra.mxu0 0.0
        %1781 = vmatprep.subr.mxu0 0.0
        %1782 = vmatpush1.msra.mxu0 0.0
        %1783 = vmatprep.subr.mxu0 0.0
        %1784 = vmatpush1.msra.mxu0 0.0
        %1785 = vmatprep.subr.mxu0 0.0
        %1786 = vmatpush1.msra.mxu0 0.0
        %1787 = vmatprep.subr.mxu0 0.0
        %1788 = vmatpush1.msra.mxu0 0.0
        %1789 = vmatprep.subr.mxu0 0.0
        %1790 = vmatpush1.msra.mxu0 0.0
        %1791 = vmatprep.subr.mxu0 0.0
        %1792 = vmatpush1.msra.mxu0 0.0
        %1793 = vmatprep.subr.mxu0 0.0
        %1794 = vmatpush1.msra.mxu0 0.0
        %1795 = vmatprep.subr.mxu0 0.0
        %1796 = vmatpush1.msra.mxu0 0.0
        %1797 = vmatprep.subr.mxu0 0.0
        %1798 = vmatpush1.msra.mxu0 0.0
        %1799 = vmatprep.subr.mxu0 0.0
        %1800 = vmatpush1.msra.mxu0 0.0
        %1801 = vmatprep.subr.mxu0 0.0
        %1802 = vmatpush1.msra.mxu0 0.0
        %1803 = vmatprep.subr.mxu0 0.0
        %1804 = vmatpush1.msra.mxu0 0.0
        %1805 = vmatprep.subr.mxu0 0.0
        %1806 = vmatpush1.msra.mxu0 0.0
        %1807 = vmatprep.subr.mxu0 0.0
        %1808 = vmatpush1.msra.mxu0 0.0
        %1809 = vmatprep.subr.mxu0 0.0
        %1810 = vmatpush1.msra.mxu0 0.0
        %1811 = vmatprep.subr.mxu0 0.0
        %1812 = vmatpush1.msra.mxu0 0.0
        %1813 = vmatprep.subr.mxu0 0.0
        %1814 = vmatpush1.msra.mxu0 0.0
        %1815 = vmatprep.subr.mxu0 0.0
        %1816 = vmatpush1.msra.mxu0 0.0
        %1817 = vmatprep.subr.mxu0 0.0
        %1818 = vmatpush1.msra.mxu0 0.0
        %1819 = vmatprep.subr.mxu0 0.0
        %1820 = vmatpush1.msra.mxu0 0.0
        %1821 = vmatprep.subr.mxu0 0.0
        %1822 = vmatpush1.msra.mxu0 0.0
        %1823 = vmatprep.subr.mxu0 0.0
        %1824 = vmatpush1.msra.mxu0 0.0
        %1825 = vmatprep.subr.mxu0 0.0
        %1826 = vmatpush1.msra.mxu0 0.0
        %1827 = vmatprep.subr.mxu0 0.0
        %1828 = vmatpush1.msra.mxu0 0.0
        %1829 = vmatprep.subr.mxu0 0.0
        %1830 = vmatpush1.msra.mxu0 0.0
        %1831 = vmatprep.subr.mxu0 0.0
        %1832 = vmatpush1.msra.mxu0 0.0
        %1833 = vmatprep.subr.mxu0 0.0
        %1834 = vmatpush1.msra.mxu0 0.0
        %1835 = vmatprep.mubr.f32.mxu0 0.0
        %1836 = vmatmul.mubr.f32.gmra.mrb[0].mxu0 %v1763
        %v1837 = vpop.f32.mrb[0].mxu0
        %v1838 = vadd.f32 0.0, %v1837
        %v1839 = vpop.f32.mrb[0].mxu0
        %1840 = vmatprep.mubr.f32.mxu0 0.0
        %1841 = vmatmul.mubr.f32.gmra.mrb[0].mxu0 %v1766
        %v1842 = vpop.f32.mrb[0].mxu0
        %v1843 = vadd.f32 0.0, %v1842
        %v1844 = vpop.f32.mrb[0].mxu0
        %1845 = vdwg.mxu0
        %v1846 = vadd.f32 %v1689, %v1838
        %v1847 = vadd.f32 %v1690, %v1843
        %v1848 = vld [vmem:[%s5] sm:$0x1]
        %v1850 = vlaneseq
        %v1851 = vshrl.u32 %v1850, 7
        %v1852 = vsub.s32 0, %v1851
        %v1853 = vrot.slane %v1848, %v1852
        %v1855 = vadd.f32 %v1846, %v1853
        %v1856 = vadd.f32 %v1847, %v1853
        %1857 = vst.msk [vmem:[%s284] sm:$0xff] %vm610, %v1855
        %1858 = vst.msk [vmem:[%s284 + $0x8] sm:$0xff] %vm610, %v1856
        %s1859 = sand.u32 %s167, 1
        %s1860 = scalar_lea.sflag [#allocation4], %s1859
        %s1861 = sand.u32 %s167, 1
        %s1862 = smul.addr %s1861, 16
        %s1863 = scalar_lea.vmem [#allocation5], %s1862
        // Predicated region
        $region49: #{tpu_custom_call.1} parent=43 // pred_check
          %p1864 = pneg %p177
        $region50: #{tpu_custom_call.1} parent=43 // pred_check_branch
          %1866 = sbr.rel (%p1864) target = $region52
        $region51: #{tpu_custom_call.1} parent=43 // pred_region
          %s1868 = ssub.s32 256, 256
          %1869 = vsyncadd %s1860, %s1868
          %s1870 = smul.addr %s23, 2
          %s1871 = smul.addr %s1870, 128
          %s1872 = scalar_lea.hbm %s6, %s1871
          %s1873 = sshll.u32 %s1863, 4
          %s1874 = int_to_ptr.vmem [resolvable:$true] %s1873
          %1879 = dma.vmem_to_hbm [thread:$0]  %s1874, 256, %s1872, %s1860, 128, 128, 8
        $region52: #{tpu_custom_call.1} parent=43 // pred_fallthru
          _
      $region44: #{tpu_custom_call.1} parent=5 // pred_fallthru
        _
      %p1880 = scmp.le.s32.totalorder 2, %s18
      // Predicated region
      $region53: #{tpu_custom_call.1} parent=5 // pred_check
        %p1881 = pneg %p1880
      $region54: #{tpu_custom_call.1} parent=5 // pred_check_branch
        %1883 = sbr.rel (%p1881) target = $region56
      $region55: #{tpu_custom_call.1} parent=5 // pred_region
        %s1884 = ssub.s32 %s18, 2
        // Predicated region
        $region57: #{tpu_custom_call.1} parent=55 // pred_check
          %p1885 = pneg %p183
        $region58: #{tpu_custom_call.1} parent=55 // pred_check_branch
          %1887 = sbr.rel (%p1885) target = $region60
        $region59: #{tpu_custom_call.1} parent=55 // pred_region
          %s1888 = sand.u32 %s168, 1
          %s1889 = scalar_lea.sflag [#allocation4], %s1888
          %s1890 = sand.u32 %s168, 1
          %s1891 = smul.addr %s1890, 16
          %s1892 = scalar_lea.vmem [#allocation5], %s1891
          %1893 = dma.done %s1889, 256
        $region60: #{tpu_custom_call.1} parent=55 // pred_fallthru
          _
      $region56: #{tpu_custom_call.1} parent=5 // pred_fallthru
        _
    $region6: #{tpu_custom_call.1} parent=1 // loop_footer
      %s22 = sadd.s32 1, %s18
    $region7: #{tpu_custom_call.1} parent=1 // loop_footer_branch
      %17 = sbr.rel target = $region3
    $region8: #{tpu_custom_call.1} parent=1 // loop_exit
      _
    %1894 = vsyncpa [#allocation3], 1
    %s1895 = scalar_lea.sflag [#allocation3], 1
    %1896 = vsyncpa %s1895, 1
    %1897 = vsyncpa [#allocation4], 1
    %s1898 = scalar_lea.sflag [#allocation4], 1
    %1899 = vsyncpa %s1898, 1

</llo_original>
